<compile_context>
chip_gen: v7x
topology: tpu7x:2x2x1
jax: 0.10.0
libtpu: 0.0.40
codegen_flags: <defaults>
</compile_context>

<pallas_src>
import functools

import jax
import jax.numpy as jnp
from jax.experimental import pallas as pl
from jax.experimental.pallas import tpu as pltpu

LATENT_DIM = 64
H1, H2, H3 = 128, 256, 512
OUT_DIM = 28 * 28          # 784


def _round_up(x, m):
    return (x + m - 1) // m * m


def _cdiv(a, b):
    return (a + b - 1) // b


def _bf16_vpu_available():
    """bf16 VALU exists on v6e / v7x; v5e and earlier would emulate it (slower)."""
    try:
        kind = jax.devices()[0].device_kind.lower()
    except Exception:
        return False
    if "tpu" not in kind:
        return False
    return not any(v in kind for v in ("v2", "v3", "v4", "v5"))


_BF16_ACTS = _bf16_vpu_available()


def prepare_params(params):
    """One-time parameter prep (hoisted out of the jitted decoder):
    weights -> bf16 (MXU-native, halves weight DMA / VMEM); biases stay f32 (1, out)."""
    w1, b1, w2, b2, w3, b3, w4, b4 = params
    return (w1.astype(jnp.bfloat16), b1,
            w2.astype(jnp.bfloat16), b2,
            w3.astype(jnp.bfloat16), b3,
            w4.astype(jnp.bfloat16), b4)


def mlp_decoder_kernel(z_ref,
                       w1_ref, b1_ref,
                       w2_ref, b2_ref,
                       w3_ref, b3_ref,
                       w4_ref, b4_ref,
                       o_ref, *, bf16_acts):
    """Fused relu(fc1) -> relu(fc2) -> relu(fc3) -> sigmoid(fc4).

    MXU inputs are bf16, accumulation is f32 (preferred_element_type).
    Inter-layer bias-add / ReLU run in bf16 on v6e/v7x and f32 on v5e.
    Sigmoid = 1 / (1 + exp(-x)) with an EUP approx reciprocal.
    """
    act_dtype = jnp.bfloat16 if bf16_acts else jnp.float32

    x = z_ref[...].astype(jnp.bfloat16)                      # (tile, 64)
    for w_ref, b_ref in ((w1_ref, b1_ref), (w2_ref, b2_ref), (w3_ref, b3_ref)):
        h = jnp.dot(x, w_ref[...], preferred_element_type=jnp.float32) + b_ref[...]
        x = jnp.maximum(h.astype(act_dtype), 0).astype(jnp.bfloat16)

    logits = jnp.dot(x, w4_ref[...], preferred_element_type=jnp.float32) + b4_ref[...]
    o_ref[...] = pl.reciprocal(1.0 + jnp.exp(-logits), approx=True).astype(o_ref.dtype)


@functools.partial(jax.jit, static_argnames=("batch_tile", "bf16_acts"))
def _mlp_decoder_impl(z, params, *, batch_tile, bf16_acts):
    w1, b1, w2, b2, w3, b3, w4, b4 = params
    # No-op if prepare_params was used (already bf16); safety cast otherwise.
    w1, w2, w3, w4 = (w1.astype(jnp.bfloat16), w2.astype(jnp.bfloat16),
                      w3.astype(jnp.bfloat16), w4.astype(jnp.bfloat16))

    B = z.shape[0]

    # Batch tiling:
    #  * sublane-aligned tiles (multiple of 8), balanced so padding waste < 8 rows,
    #  * >= 2 grid steps for B >= 16 so ("parallel",) shards across both TCs (v7x),
    #  * tile size capped at batch_tile to amortize per-step overhead.
    B8 = _round_up(max(B, 8), 8)
    n_tiles = _cdiv(B8, max(batch_tile, 8))
    if B8 >= 16:
        n_tiles = max(n_tiles, 2)
    eff_tile = _round_up(_cdiv(B8, n_tiles), 8)
    B_pad = eff_tile * n_tiles
    if B_pad != B:
        z = jnp.pad(z, ((0, B_pad - B), (0, 0)))

    def resident_spec(shape):
        # Constant index_map -> weight/bias tiles are DMA'd once and stay
        # resident in VMEM across the whole grid.
        return pl.BlockSpec(shape, lambda i: (0,) * len(shape))

    flops = 2 * B_pad * (LATENT_DIM * H1 + H1 * H2 + H2 * H3 + H3 * OUT_DIM)
    transcendentals = 2 * B_pad * OUT_DIM          # exp + reciprocal
    bytes_accessed = (
        2 * (LATENT_DIM * H1 + H1 * H2 + H2 * H3 + H3 * OUT_DIM)   # bf16 weights
        + 4 * (H1 + H2 + H3 + OUT_DIM)                             # f32 biases
        + 4 * B_pad * LATENT_DIM                                   # z in (f32)
        + 4 * B_pad * OUT_DIM                                      # out (f32)
    )

    kernel = functools.partial(mlp_decoder_kernel, bf16_acts=bf16_acts)

    out_flat = pl.pallas_call(
        kernel,
        out_shape=jax.ShapeDtypeStruct((B_pad, OUT_DIM), jnp.float32),
        grid_spec=pltpu.PrefetchScalarGridSpec(
            num_scalar_prefetch=0,
            grid=(n_tiles,),
            in_specs=[
                pl.BlockSpec((eff_tile, LATENT_DIM), lambda i: (i, 0)),
                resident_spec((LATENT_DIM, H1)), resident_spec((1, H1)),
                resident_spec((H1, H2)), resident_spec((1, H2)),
                resident_spec((H2, H3)), resident_spec((1, H3)),
                resident_spec((H3, OUT_DIM)), resident_spec((1, OUT_DIM)),
            ],
            out_specs=pl.BlockSpec((eff_tile, OUT_DIM), lambda i: (i, 0)),
        ),
        compiler_params=pltpu.CompilerParams(
            dimension_semantics=("parallel",),   # shard batch tiles over TCs (v7x)
            vmem_limit_bytes=32 * 1024 * 1024,
        ),
        cost_estimate=pl.CostEstimate(
            flops=flops,
            transcendentals=transcendentals,
            bytes_accessed=bytes_accessed,
        ),
    )(z, w1, b1, w2, b2, w3, b3, w4, b4)

    # Drop batch padding (metadata-only when B == B_pad), then
    # nn.Unflatten(dim=1, (1, 28, 28)) -> NCHW (pure reshape).
    return out_flat[:B].reshape(B, 1, 28, 28)


def mlp_decoder(z, params, *, batch_tile=512):
    """z: (B, LATENT_DIM) f32 -> (B, 1, 28, 28) f32. `params` ideally from prepare_params."""
    return _mlp_decoder_impl(z, params, batch_tile=batch_tile, bf16_acts=_BF16_ACTS)


def init_params(key):
    """Deterministic init mirroring torch.nn.Linear default U[-1/sqrt(fan_in), +1/sqrt(fan_in)].
    Weights stored transposed: (in_features, out_features), all f32."""
    dims = [(LATENT_DIM, H1), (H1, H2), (H2, H3), (H3, OUT_DIM)]
    params = []
    for (fan_in, fan_out) in dims:
        key, kw, kb = jax.random.split(key, 3)
        bound = 1.0 / jnp.sqrt(fan_in)
        w = jax.random.uniform(kw, (fan_in, fan_out), jnp.float32, -bound, bound)
        b = jax.random.uniform(kb, (1, fan_out), jnp.float32, -bound, bound)
        params += [w, b]
    return tuple(params)


def reference(z, params):
    w1, b1, w2, b2, w3, b3, w4, b4 = params
    h = jax.nn.relu(z @ w1 + b1)
    h = jax.nn.relu(h @ w2 + b2)
    h = jax.nn.relu(h @ w3 + b3)
    h = jax.nn.sigmoid(h @ w4 + b4)
    return h.reshape(z.shape[0], 1, 28, 28)


if __name__ == "__main__":
    key = jax.random.PRNGKey(0)
    key, kz, kz2 = jax.random.split(key, 3)
    raw_params = init_params(key)
    params = prepare_params(raw_params)   # one-time bf16 weight prep

    # Small aligned batch (single grid tile).
    B = 8
    z = jax.random.normal(kz, (B, LATENT_DIM), jnp.float32)
    out = jax.block_until_ready(mlp_decoder(z, params))
    ref = reference(z, raw_params)
    assert out.shape == (B, 1, 28, 28), out.shape
    err = float(jnp.max(jnp.abs(out - ref)))
    # bf16 MXU inputs (+ bf16 activations on v6e/v7x, approx reciprocal) -> loose tol.
    assert err < 3e-2, err

    # Ragged batch: exercises zero-pad + 2-tile grid (megacore path on v7x).
    B2 = 12
    z2 = jax.random.normal(kz2, (B2, LATENT_DIM), jnp.float32)
    out2 = jax.block_until_ready(mlp_decoder(z2, params))
    ref2 = reference(z2, raw_params)
    assert out2.shape == (B2, 1, 28, 28), out2.shape
    err2 = float(jnp.max(jnp.abs(out2 - ref2)))
    assert err2 < 3e-2, err2

    print("KERNEL_OK")
</pallas_src>

<mosaic_0001>
module attributes {stable_mosaic.version = 11 : i64} {
  func.func @mlp_decoder_kernel(%arg0: i32, %arg1: memref<8x64xf32, #tpu.memory_space<vmem>>, %arg2: memref<64x128xbf16, #tpu.memory_space<vmem>>, %arg3: memref<1x128xf32, #tpu.memory_space<vmem>>, %arg4: memref<128x256xbf16, #tpu.memory_space<vmem>>, %arg5: memref<1x256xf32, #tpu.memory_space<vmem>>, %arg6: memref<256x512xbf16, #tpu.memory_space<vmem>>, %arg7: memref<1x512xf32, #tpu.memory_space<vmem>>, %arg8: memref<512x784xbf16, #tpu.memory_space<vmem>>, %arg9: memref<1x784xf32, #tpu.memory_space<vmem>>, %arg10: memref<8x784xf32, #tpu.memory_space<vmem>>) attributes {dimension_semantics = [#tpu.dimension_semantics<parallel>], iteration_bounds = array<i64: 1>, scalar_prefetch = 0 : i64, scratch_operands = 0 : i64, tpu.core_type = #tpu.core_type<tc>, window_params = [{transform_indices = @transform_0, window_bounds = array<i64: 8, 64>}, {pipeline_mode = #tpu.pipeline_mode<synchronous>, transform_indices = @transform_1, window_bounds = array<i64: 64, 128>}, {pipeline_mode = #tpu.pipeline_mode<synchronous>, transform_indices = @transform_2, window_bounds = array<i64: 1, 128>}, {pipeline_mode = #tpu.pipeline_mode<synchronous>, transform_indices = @transform_3, window_bounds = array<i64: 128, 256>}, {pipeline_mode = #tpu.pipeline_mode<synchronous>, transform_indices = @transform_4, window_bounds = array<i64: 1, 256>}, {pipeline_mode = #tpu.pipeline_mode<synchronous>, transform_indices = @transform_5, window_bounds = array<i64: 256, 512>}, {pipeline_mode = #tpu.pipeline_mode<synchronous>, transform_indices = @transform_6, window_bounds = array<i64: 1, 512>}, {pipeline_mode = #tpu.pipeline_mode<synchronous>, transform_indices = @transform_7, window_bounds = array<i64: 512, 784>}, {pipeline_mode = #tpu.pipeline_mode<synchronous>, transform_indices = @transform_8, window_bounds = array<i64: 1, 784>}, {transform_indices = @transform_9, window_bounds = array<i64: 8, 784>}]} {
    %c0 = arith.constant 0 : index
    %c0_0 = arith.constant 0 : index
    %0 = vector.load %arg1[%c0, %c0_0] : memref<8x64xf32, #tpu.memory_space<vmem>>, vector<8x64xf32>
    %1 = arith.truncf %0 : vector<8x64xf32> to vector<8x64xbf16>
    %c0_1 = arith.constant 0 : index
    %c0_2 = arith.constant 0 : index
    %2 = vector.load %arg2[%c0_1, %c0_2] : memref<64x128xbf16, #tpu.memory_space<vmem>>, vector<64x128xbf16>
    %cst = arith.constant dense<0.000000e+00> : vector<8x128xf32>
    %3 = tpu.matmul %1, %2, %cst {dimension_numbers = #tpu.dot_dimension_numbers<[1], [0], [0], [1], [0, 0, 1, 1], [], []>} : vector<8x64xbf16>, vector<64x128xbf16>, vector<8x128xf32> -> vector<8x128xf32>
    %c0_3 = arith.constant 0 : index
    %c0_4 = arith.constant 0 : index
    %4 = vector.load %arg3[%c0_3, %c0_4] : memref<1x128xf32, #tpu.memory_space<vmem>>, vector<1x128xf32>
    %5 = vector.broadcast %4 : vector<1x128xf32> to vector<8x128xf32>
    %6 = arith.addf %3, %5 : vector<8x128xf32>
    %cst_5 = arith.constant 0.000000e+00 : f32
    %7 = vector.broadcast %cst_5 : f32 to vector<8x128xf32>
    %8 = arith.maximumf %6, %7 : vector<8x128xf32>
    %9 = arith.truncf %8 : vector<8x128xf32> to vector<8x128xbf16>
    %c0_6 = arith.constant 0 : index
    %c0_7 = arith.constant 0 : index
    %10 = vector.load %arg4[%c0_6, %c0_7] : memref<128x256xbf16, #tpu.memory_space<vmem>>, vector<128x256xbf16>
    %cst_8 = arith.constant dense<0.000000e+00> : vector<8x256xf32>
    %11 = tpu.matmul %9, %10, %cst_8 {dimension_numbers = #tpu.dot_dimension_numbers<[1], [0], [0], [1], [0, 0, 1, 1], [], []>} : vector<8x128xbf16>, vector<128x256xbf16>, vector<8x256xf32> -> vector<8x256xf32>
    %c0_9 = arith.constant 0 : index
    %c0_10 = arith.constant 0 : index
    %12 = vector.load %arg5[%c0_9, %c0_10] : memref<1x256xf32, #tpu.memory_space<vmem>>, vector<1x256xf32>
    %13 = vector.broadcast %12 : vector<1x256xf32> to vector<8x256xf32>
    %14 = arith.addf %11, %13 : vector<8x256xf32>
    %cst_11 = arith.constant 0.000000e+00 : f32
    %15 = vector.broadcast %cst_11 : f32 to vector<8x256xf32>
    %16 = arith.maximumf %14, %15 : vector<8x256xf32>
    %17 = arith.truncf %16 : vector<8x256xf32> to vector<8x256xbf16>
    %c0_12 = arith.constant 0 : index
    %c0_13 = arith.constant 0 : index
    %18 = vector.load %arg6[%c0_12, %c0_13] : memref<256x512xbf16, #tpu.memory_space<vmem>>, vector<256x512xbf16>
    %cst_14 = arith.constant dense<0.000000e+00> : vector<8x512xf32>
    %19 = tpu.matmul %17, %18, %cst_14 {dimension_numbers = #tpu.dot_dimension_numbers<[1], [0], [0], [1], [0, 0, 1, 1], [], []>} : vector<8x256xbf16>, vector<256x512xbf16>, vector<8x512xf32> -> vector<8x512xf32>
    %c0_15 = arith.constant 0 : index
    %c0_16 = arith.constant 0 : index
    %20 = vector.load %arg7[%c0_15, %c0_16] : memref<1x512xf32, #tpu.memory_space<vmem>>, vector<1x512xf32>
    %21 = vector.broadcast %20 : vector<1x512xf32> to vector<8x512xf32>
    %22 = arith.addf %19, %21 : vector<8x512xf32>
    %cst_17 = arith.constant 0.000000e+00 : f32
    %23 = vector.broadcast %cst_17 : f32 to vector<8x512xf32>
    %24 = arith.maximumf %22, %23 : vector<8x512xf32>
    %25 = arith.truncf %24 : vector<8x512xf32> to vector<8x512xbf16>
    %c0_18 = arith.constant 0 : index
    %c0_19 = arith.constant 0 : index
    %26 = vector.load %arg8[%c0_18, %c0_19] : memref<512x784xbf16, #tpu.memory_space<vmem>>, vector<512x784xbf16>
    %cst_20 = arith.constant dense<0.000000e+00> : vector<8x784xf32>
    %27 = tpu.matmul %25, %26, %cst_20 {dimension_numbers = #tpu.dot_dimension_numbers<[1], [0], [0], [1], [0, 0, 1, 1], [], []>} : vector<8x512xbf16>, vector<512x784xbf16>, vector<8x784xf32> -> vector<8x784xf32>
    %c0_21 = arith.constant 0 : index
    %c0_22 = arith.constant 0 : index
    %28 = vector.load %arg9[%c0_21, %c0_22] : memref<1x784xf32, #tpu.memory_space<vmem>>, vector<1x784xf32>
    %29 = vector.broadcast %28 : vector<1x784xf32> to vector<8x784xf32>
    %30 = arith.addf %27, %29 : vector<8x784xf32>
    %cst_23 = arith.constant 0.000000e+00 : f32
    %31 = vector.broadcast %cst_23 : f32 to vector<8x784xf32>
    %32 = arith.subf %31, %30 : vector<8x784xf32>
    %33 = math.exp %32 : vector<8x784xf32>
    %cst_24 = arith.constant 1.000000e+00 : f32
    %34 = vector.broadcast %cst_24 : f32 to vector<8x784xf32>
    %35 = arith.addf %34, %33 : vector<8x784xf32>
    %36 = tpu.reciprocal %35 {approx = true} : vector<8x784xf32> -> vector<8x784xf32>
    %c0_25 = arith.constant 0 : index
    %c0_26 = arith.constant 0 : index
    %37 = vector.load %arg10[%c0_25, %c0_26] : memref<8x784xf32, #tpu.memory_space<vmem>>, vector<8x784xf32>
    tpu.vector_store %arg10[%c0_25, %c0_26], %36 {strides = array<i32>} : memref<8x784xf32, #tpu.memory_space<vmem>>, vector<8x784xf32>,
    return
  }
  func.func @transform_0(%arg0: i32) -> (i32, i32) {
    %c0_i32 = arith.constant 0 : i32
    %c0_i32_0 = arith.constant 0 : i32
    return %arg0, %c0_i32 : i32, i32
  }
  func.func @transform_1(%arg0: i32) -> (i32, i32) {
    %c0_i32 = arith.constant 0 : i32
    %c0_i32_0 = arith.constant 0 : i32
    %c0_i32_1 = arith.constant 0 : i32
    return %c0_i32, %c0_i32_0 : i32, i32
  }
  func.func @transform_2(%arg0: i32) -> (i32, i32) {
    %c0_i32 = arith.constant 0 : i32
    %c0_i32_0 = arith.constant 0 : i32
    %c0_i32_1 = arith.constant 0 : i32
    return %c0_i32, %c0_i32_0 : i32, i32
  }
  func.func @transform_3(%arg0: i32) -> (i32, i32) {
    %c0_i32 = arith.constant 0 : i32
    %c0_i32_0 = arith.constant 0 : i32
    %c0_i32_1 = arith.constant 0 : i32
    return %c0_i32, %c0_i32_0 : i32, i32
  }
  func.func @transform_4(%arg0: i32) -> (i32, i32) {
    %c0_i32 = arith.constant 0 : i32
    %c0_i32_0 = arith.constant 0 : i32
    %c0_i32_1 = arith.constant 0 : i32
    return %c0_i32, %c0_i32_0 : i32, i32
  }
  func.func @transform_5(%arg0: i32) -> (i32, i32) {
    %c0_i32 = arith.constant 0 : i32
    %c0_i32_0 = arith.constant 0 : i32
    %c0_i32_1 = arith.constant 0 : i32
    return %c0_i32, %c0_i32_0 : i32, i32
  }
  func.func @transform_6(%arg0: i32) -> (i32, i32) {
    %c0_i32 = arith.constant 0 : i32
    %c0_i32_0 = arith.constant 0 : i32
    %c0_i32_1 = arith.constant 0 : i32
    return %c0_i32, %c0_i32_0 : i32, i32
  }
  func.func @transform_7(%arg0: i32) -> (i32, i32) {
    %c0_i32 = arith.constant 0 : i32
    %c0_i32_0 = arith.constant 0 : i32
    %c0_i32_1 = arith.constant 0 : i32
    return %c0_i32, %c0_i32_0 : i32, i32
  }
  func.func @transform_8(%arg0: i32) -> (i32, i32) {
    %c0_i32 = arith.constant 0 : i32
    %c0_i32_0 = arith.constant 0 : i32
    %c0_i32_1 = arith.constant 0 : i32
    return %c0_i32, %c0_i32_0 : i32, i32
  }
  func.func @transform_9(%arg0: i32) -> (i32, i32) {
    %c0_i32 = arith.constant 0 : i32
    %c0_i32_0 = arith.constant 0 : i32
    return %arg0, %c0_i32 : i32, i32
  }
}

</mosaic_0001>

<llo_original>
// kernel: _mlp_decoder_impl.1
$region0: #{_mlp_decoder_impl.1}
  #allocation0 [shape = 'u32[]', space=smem, size = 0x4, offset = 0x4, fixed_abs, tag = 'smem constant byte address 0x4 - core index']
  #allocation1 [shape = 'u32[144,128]{1,0:T(1,128)}', space=vmem, size = 0x12000, scoped, tag = 'internal scratch']
  %s0 = inlined_call_operand.vmem [shape: f32[8,64], index: 0, kind: input, shape index: {}]
  %s1 = inlined_call_operand.vmem [shape: bf16[64,128], index: 1, kind: input, shape index: {}]
  %s2 = inlined_call_operand.vmem [shape: f32[1,128], index: 2, kind: input, shape index: {}]
  %s3 = inlined_call_operand.vmem [shape: bf16[128,256], index: 3, kind: input, shape index: {}]
  %s4 = inlined_call_operand.vmem [shape: f32[1,256], index: 4, kind: input, shape index: {}]
  %s5 = inlined_call_operand.vmem [shape: bf16[256,512], index: 5, kind: input, shape index: {}]
  %s6 = inlined_call_operand.vmem [shape: f32[1,512], index: 6, kind: input, shape index: {}]
  %s7 = inlined_call_operand.vmem [shape: bf16[512,784], index: 7, kind: input, shape index: {}]
  %s8 = inlined_call_operand.vmem [shape: f32[1,784], index: 8, kind: input, shape index: {}]
  %s9 = inlined_call_operand.vmem [shape: f32[8,784], index: 9, kind: output, shape index: {}]
  %s10 = sld [smem:[#allocation0]]
  $region46: #{_mlp_decoder_impl.1} parent=0
    _
  %s12 = ssub.s32 1, %s10
  %s13 = scalar_select 0, %s12, %s10
  // Predicated region
  $region2: #{_mlp_decoder_impl.1} parent=0 // pred_check
    _
  $region3: #{_mlp_decoder_impl.1} parent=0 // pred_check_branch
    %15 = sbr.rel (0) target = $region5
  $region4: #{_mlp_decoder_impl.1} parent=0 // pred_region
    _
  $region5: #{_mlp_decoder_impl.1} parent=0 // pred_fallthru
    _
  // Predicated region
  $region6: #{_mlp_decoder_impl.1} parent=0 // pred_check
    _
  $region7: #{_mlp_decoder_impl.1} parent=0 // pred_check_branch
    %17 = sbr.rel (0) target = $region9
  $region8: #{_mlp_decoder_impl.1} parent=0 // pred_region
    _
  $region9: #{_mlp_decoder_impl.1} parent=0 // pred_fallthru
    _
  // Predicated region
  $region10: #{_mlp_decoder_impl.1} parent=0 // pred_check
    _
  $region11: #{_mlp_decoder_impl.1} parent=0 // pred_check_branch
    %19 = sbr.rel (0) target = $region13
  $region12: #{_mlp_decoder_impl.1} parent=0 // pred_region
    _
  $region13: #{_mlp_decoder_impl.1} parent=0 // pred_fallthru
    _
  // Predicated region
  $region14: #{_mlp_decoder_impl.1} parent=0 // pred_check
    _
  $region15: #{_mlp_decoder_impl.1} parent=0 // pred_check_branch
    %21 = sbr.rel (0) target = $region17
  $region16: #{_mlp_decoder_impl.1} parent=0 // pred_region
    _
  $region17: #{_mlp_decoder_impl.1} parent=0 // pred_fallthru
    _
  // Predicated region
  $region18: #{_mlp_decoder_impl.1} parent=0 // pred_check
    _
  $region19: #{_mlp_decoder_impl.1} parent=0 // pred_check_branch
    %23 = sbr.rel (0) target = $region21
  $region20: #{_mlp_decoder_impl.1} parent=0 // pred_region
    _
  $region21: #{_mlp_decoder_impl.1} parent=0 // pred_fallthru
    _
  // Predicated region
  $region22: #{_mlp_decoder_impl.1} parent=0 // pred_check
    _
  $region23: #{_mlp_decoder_impl.1} parent=0 // pred_check_branch
    %25 = sbr.rel (0) target = $region25
  $region24: #{_mlp_decoder_impl.1} parent=0 // pred_region
    _
  $region25: #{_mlp_decoder_impl.1} parent=0 // pred_fallthru
    _
  // Predicated region
  $region26: #{_mlp_decoder_impl.1} parent=0 // pred_check
    _
  $region27: #{_mlp_decoder_impl.1} parent=0 // pred_check_branch
    %27 = sbr.rel (0) target = $region29
  $region28: #{_mlp_decoder_impl.1} parent=0 // pred_region
    _
  $region29: #{_mlp_decoder_impl.1} parent=0 // pred_fallthru
    _
  // Predicated region
  $region30: #{_mlp_decoder_impl.1} parent=0 // pred_check
    _
  $region31: #{_mlp_decoder_impl.1} parent=0 // pred_check_branch
    %29 = sbr.rel (0) target = $region33
  $region32: #{_mlp_decoder_impl.1} parent=0 // pred_region
    _
  $region33: #{_mlp_decoder_impl.1} parent=0 // pred_fallthru
    _
  // Predicated region
  $region34: #{_mlp_decoder_impl.1} parent=0 // pred_check
    _
  $region35: #{_mlp_decoder_impl.1} parent=0 // pred_check_branch
    %31 = sbr.rel (0) target = $region37
  $region36: #{_mlp_decoder_impl.1} parent=0 // pred_region
    _
  $region37: #{_mlp_decoder_impl.1} parent=0 // pred_fallthru
    _
  %v33 = vld [vmem:[%s0] sm:$0xff]
  %v34 = vpack.c.bf16 %v33, %v33
  %v35 = vld [vmem:[%s1] sm:$0xf]
  %v36 = vld [vmem:[%s1 + $0x4] sm:$0xf]
  %v37 = vld [vmem:[%s1 + $0x8] sm:$0xf]
  %v38 = vld [vmem:[%s1 + $0xc] sm:$0xf]
  %v39 = vld [vmem:[%s1 + $0x10] sm:$0xf]
  %v40 = vld [vmem:[%s1 + $0x14] sm:$0xf]
  %v41 = vld [vmem:[%s1 + $0x18] sm:$0xf]
  %v42 = vld [vmem:[%s1 + $0x1c] sm:$0xf]
  %v43 = vld [vmem:[%s2] sm:$0x1]
  %v45 = vlaneseq
  %v46 = vshrl.u32 %v45, 7
  %v47 = vsub.s32 0, %v46
  %v48 = vrot.slane %v43, %v47
  %v58 = vunpack.c.l.b16 %v35
  %v59 = vunpack.c.l.b16 %v36
  %v60 = vunpack.c.l.b16 %v37
  %v61 = vunpack.c.l.b16 %v38
  %v62 = vunpack.c.l.b16 %v39
  %v63 = vunpack.c.l.b16 %v40
  %v64 = vunpack.c.l.b16 %v41
  %v65 = vunpack.c.l.b16 %v42
  %v66 = vpack.c.b16 %v59, %v58
  %v67 = vpack.c.b16 %v61, %v60
  %v68 = vpack.c.b16 %v63, %v62
  %v69 = vpack.c.b16 %v65, %v64
  %vm74 = vcmask 523264
  %v76 = vsel %vm74, %v34, 0
  %78 = vmatprep.subr.bf16.mxu0 0
  %79 = vmatpush1.bf16.msra.mxu0 %v66
  %80 = vmatprep.subr.bf16.mxu0 0
  %81 = vmatpush1.bf16.msra.mxu0 %v67
  %82 = vmatprep.subr.bf16.mxu0 0
  %83 = vmatpush1.bf16.msra.mxu0 %v68
  %84 = vmatprep.subr.bf16.mxu0 0
  %85 = vmatpush1.bf16.msra.mxu0 %v69
  %86 = vmatprep.subr.bf16.mxu0 0
  %87 = vmatpush1.bf16.msra.mxu0 0
  %88 = vmatprep.subr.bf16.mxu0 0
  %89 = vmatpush1.bf16.msra.mxu0 0
  %90 = vmatprep.subr.bf16.mxu0 0
  %91 = vmatpush1.bf16.msra.mxu0 0
  %92 = vmatprep.subr.bf16.mxu0 0
  %93 = vmatpush1.bf16.msra.mxu0 0
  %94 = vmatprep.subr.bf16.mxu0 0
  %95 = vmatpush1.bf16.msra.mxu0 0
  %96 = vmatprep.subr.bf16.mxu0 0
  %97 = vmatpush1.bf16.msra.mxu0 0
  %98 = vmatprep.subr.bf16.mxu0 0
  %99 = vmatpush1.bf16.msra.mxu0 0
  %100 = vmatprep.subr.bf16.mxu0 0
  %101 = vmatpush1.bf16.msra.mxu0 0
  %102 = vmatprep.subr.bf16.mxu0 0
  %103 = vmatpush1.bf16.msra.mxu0 0
  %104 = vmatprep.subr.bf16.mxu0 0
  %105 = vmatpush1.bf16.msra.mxu0 0
  %106 = vmatprep.subr.bf16.mxu0 0
  %107 = vmatpush1.bf16.msra.mxu0 0
  %108 = vmatprep.subr.bf16.mxu0 0
  %109 = vmatpush1.bf16.msra.mxu0 0
  %110 = vmatprep.mubr.bf16.mxu0 0
  %111 = vmatmul.mubr.bf16.gmra.mrb[0].mxu0 %v76
  %v112 = vpop.f32.mrb[0].mxu0
  %v113 = vadd.f32 %v48, %v112
  %v114 = vpop.f32.mrb[0].mxu0
  %v115 = vpop.f32.mrb[0].mxu0
  %v116 = vpop.f32.mrb[0].mxu0
  %117 = vdwg.mxu0
  %v118 = vmax.f32 %v113, 0.0
  %v119 = vpack.c.bf16 %v118, %v118
  %v120 = vld [vmem:[%s3] sm:$0xff]
  %v121 = vld [vmem:[%s3 + $0x8] sm:$0xff]
  %v122 = vld [vmem:[%s3 + $0x10] sm:$0xff]
  %v123 = vld [vmem:[%s3 + $0x18] sm:$0xff]
  %v124 = vld [vmem:[%s3 + $0x20] sm:$0xff]
  %v125 = vld [vmem:[%s3 + $0x28] sm:$0xff]
  %v126 = vld [vmem:[%s3 + $0x30] sm:$0xff]
  %v127 = vld [vmem:[%s3 + $0x38] sm:$0xff]
  %v128 = vld [vmem:[%s3 + $0x40] sm:$0xff]
  %v129 = vld [vmem:[%s3 + $0x48] sm:$0xff]
  %v130 = vld [vmem:[%s3 + $0x50] sm:$0xff]
  %v131 = vld [vmem:[%s3 + $0x58] sm:$0xff]
  %v132 = vld [vmem:[%s3 + $0x60] sm:$0xff]
  %v133 = vld [vmem:[%s3 + $0x68] sm:$0xff]
  %v134 = vld [vmem:[%s3 + $0x70] sm:$0xff]
  %v135 = vld [vmem:[%s3 + $0x78] sm:$0xff]
  %v136 = vld [vmem:[%s4] sm:$0x3]
  %v138 = vlaneseq
  %v139 = vshrl.u32 %v138, 7
  %v140 = vsub.s32 0, %v139
  %v141 = vrot.slane %v136, %v140
  %v142 = vlaneseq
  %v143 = vshrl.u32 %v142, 7
  %v144 = vsub.s32 1, %v143
  %v145 = vrot.slane %v136, %v144
  %v164 = vunpack.c.l.b16 %v120
  %v165 = vunpack.c.h.b16 %v120
  %v166 = vunpack.c.l.b16 %v121
  %v167 = vunpack.c.h.b16 %v121
  %v168 = vunpack.c.l.b16 %v122
  %v169 = vunpack.c.h.b16 %v122
  %v170 = vunpack.c.l.b16 %v123
  %v171 = vunpack.c.h.b16 %v123
  %v172 = vunpack.c.l.b16 %v124
  %v173 = vunpack.c.h.b16 %v124
  %v174 = vunpack.c.l.b16 %v125
  %v175 = vunpack.c.h.b16 %v125
  %v176 = vunpack.c.l.b16 %v126
  %v177 = vunpack.c.h.b16 %v126
  %v178 = vunpack.c.l.b16 %v127
  %v179 = vunpack.c.h.b16 %v127
  %v180 = vunpack.c.l.b16 %v128
  %v181 = vunpack.c.h.b16 %v128
  %v182 = vunpack.c.l.b16 %v129
  %v183 = vunpack.c.h.b16 %v129
  %v184 = vunpack.c.l.b16 %v130
  %v185 = vunpack.c.h.b16 %v130
  %v186 = vunpack.c.l.b16 %v131
  %v187 = vunpack.c.h.b16 %v131
  %v188 = vunpack.c.l.b16 %v132
  %v189 = vunpack.c.h.b16 %v132
  %v190 = vunpack.c.l.b16 %v133
  %v191 = vunpack.c.h.b16 %v133
  %v192 = vunpack.c.l.b16 %v134
  %v193 = vunpack.c.h.b16 %v134
  %v194 = vunpack.c.l.b16 %v135
  %v195 = vunpack.c.h.b16 %v135
  %v196 = vpack.c.b16 %v166, %v164
  %v197 = vpack.c.b16 %v167, %v165
  %v198 = vpack.c.b16 %v170, %v168
  %v199 = vpack.c.b16 %v171, %v169
  %v200 = vpack.c.b16 %v174, %v172
  %v201 = vpack.c.b16 %v175, %v173
  %v202 = vpack.c.b16 %v178, %v176
  %v203 = vpack.c.b16 %v179, %v177
  %v204 = vpack.c.b16 %v182, %v180
  %v205 = vpack.c.b16 %v183, %v181
  %v206 = vpack.c.b16 %v186, %v184
  %v207 = vpack.c.b16 %v187, %v185
  %v208 = vpack.c.b16 %v190, %v188
  %v209 = vpack.c.b16 %v191, %v189
  %v210 = vpack.c.b16 %v194, %v192
  %v211 = vpack.c.b16 %v195, %v193
  %228 = vmatprep.subr.bf16.mxu0 %v197
  %229 = vmatpush1.bf16.msra.mxu0 %v196
  %230 = vmatprep.subr.bf16.mxu0 %v199
  %231 = vmatpush1.bf16.msra.mxu0 %v198
  %232 = vmatprep.subr.bf16.mxu0 %v201
  %233 = vmatpush1.bf16.msra.mxu0 %v200
  %234 = vmatprep.subr.bf16.mxu0 %v203
  %235 = vmatpush1.bf16.msra.mxu0 %v202
  %236 = vmatprep.subr.bf16.mxu0 %v205
  %237 = vmatpush1.bf16.msra.mxu0 %v204
  %238 = vmatprep.subr.bf16.mxu0 %v207
  %239 = vmatpush1.bf16.msra.mxu0 %v206
  %240 = vmatprep.subr.bf16.mxu0 %v209
  %241 = vmatpush1.bf16.msra.mxu0 %v208
  %242 = vmatprep.subr.bf16.mxu0 %v211
  %243 = vmatpush1.bf16.msra.mxu0 %v210
  %244 = vmatprep.subr.bf16.mxu0 0
  %245 = vmatpush1.bf16.msra.mxu0 0
  %246 = vmatprep.subr.bf16.mxu0 0
  %247 = vmatpush1.bf16.msra.mxu0 0
  %248 = vmatprep.subr.bf16.mxu0 0
  %249 = vmatpush1.bf16.msra.mxu0 0
  %250 = vmatprep.subr.bf16.mxu0 0
  %251 = vmatpush1.bf16.msra.mxu0 0
  %252 = vmatprep.subr.bf16.mxu0 0
  %253 = vmatpush1.bf16.msra.mxu0 0
  %254 = vmatprep.subr.bf16.mxu0 0
  %255 = vmatpush1.bf16.msra.mxu0 0
  %256 = vmatprep.subr.bf16.mxu0 0
  %257 = vmatpush1.bf16.msra.mxu0 0
  %258 = vmatprep.subr.bf16.mxu0 0
  %259 = vmatpush1.bf16.msra.mxu0 0
  %260 = vmatprep.mubr.bf16.mxu0 0
  %261 = vmatmul.mubr.bf16.gmra.mrb[0].mxu0 %v119
  %v262 = vpop.f32.mrb[0].mxu0
  %v263 = vadd.f32 %v141, %v262
  %v264 = vpop.f32.mrb[0].mxu0
  %v265 = vadd.f32 %v145, %v264
  %v266 = vpop.f32.mrb[0].mxu0
  %v267 = vpop.f32.mrb[0].mxu0
  %268 = vdwg.mxu0
  %v269 = vmax.f32 %v263, 0.0
  %v270 = vmax.f32 %v265, 0.0
  %v271 = vpack.c.bf16 %v269, %v269
  %v272 = vpack.c.bf16 %v270, %v270
  %v273 = vld [vmem:[%s5] sm:$0xff]
  %v274 = vld [vmem:[%s5 + $0x8] sm:$0xff]
  %v275 = vld [vmem:[%s5 + $0x10] sm:$0xff]
  %v276 = vld [vmem:[%s5 + $0x18] sm:$0xff]
  %v277 = vld [vmem:[%s5 + $0x20] sm:$0xff]
  %v278 = vld [vmem:[%s5 + $0x28] sm:$0xff]
  %v279 = vld [vmem:[%s5 + $0x30] sm:$0xff]
  %v280 = vld [vmem:[%s5 + $0x38] sm:$0xff]
  %v281 = vld [vmem:[%s5 + $0x40] sm:$0xff]
  %v282 = vld [vmem:[%s5 + $0x48] sm:$0xff]
  %v283 = vld [vmem:[%s5 + $0x50] sm:$0xff]
  %v284 = vld [vmem:[%s5 + $0x58] sm:$0xff]
  %v285 = vld [vmem:[%s5 + $0x60] sm:$0xff]
  %v286 = vld [vmem:[%s5 + $0x68] sm:$0xff]
  %v287 = vld [vmem:[%s5 + $0x70] sm:$0xff]
  %v288 = vld [vmem:[%s5 + $0x78] sm:$0xff]
  %v289 = vld [vmem:[%s5 + $0x80] sm:$0xff]
  %v290 = vld [vmem:[%s5 + $0x88] sm:$0xff]
  %v291 = vld [vmem:[%s5 + $0x90] sm:$0xff]
  %v292 = vld [vmem:[%s5 + $0x98] sm:$0xff]
  %v293 = vld [vmem:[%s5 + $0xa0] sm:$0xff]
  %v294 = vld [vmem:[%s5 + $0xa8] sm:$0xff]
  %v295 = vld [vmem:[%s5 + $0xb0] sm:$0xff]
  %v296 = vld [vmem:[%s5 + $0xb8] sm:$0xff]
  %v297 = vld [vmem:[%s5 + $0xc0] sm:$0xff]
  %v298 = vld [vmem:[%s5 + $0xc8] sm:$0xff]
  %v299 = vld [vmem:[%s5 + $0xd0] sm:$0xff]
  %v300 = vld [vmem:[%s5 + $0xd8] sm:$0xff]
  %v301 = vld [vmem:[%s5 + $0xe0] sm:$0xff]
  %v302 = vld [vmem:[%s5 + $0xe8] sm:$0xff]
  %v303 = vld [vmem:[%s5 + $0xf0] sm:$0xff]
  %v304 = vld [vmem:[%s5 + $0xf8] sm:$0xff]
  %v305 = vld [vmem:[%s5 + $0x100] sm:$0xff]
  %v306 = vld [vmem:[%s5 + $0x108] sm:$0xff]
  %v307 = vld [vmem:[%s5 + $0x110] sm:$0xff]
  %v308 = vld [vmem:[%s5 + $0x118] sm:$0xff]
  %v309 = vld [vmem:[%s5 + $0x120] sm:$0xff]
  %v310 = vld [vmem:[%s5 + $0x128] sm:$0xff]
  %v311 = vld [vmem:[%s5 + $0x130] sm:$0xff]
  %v312 = vld [vmem:[%s5 + $0x138] sm:$0xff]
  %v313 = vld [vmem:[%s5 + $0x140] sm:$0xff]
  %v314 = vld [vmem:[%s5 + $0x148] sm:$0xff]
  %v315 = vld [vmem:[%s5 + $0x150] sm:$0xff]
  %v316 = vld [vmem:[%s5 + $0x158] sm:$0xff]
  %v317 = vld [vmem:[%s5 + $0x160] sm:$0xff]
  %v318 = vld [vmem:[%s5 + $0x168] sm:$0xff]
  %v319 = vld [vmem:[%s5 + $0x170] sm:$0xff]
  %v320 = vld [vmem:[%s5 + $0x178] sm:$0xff]
  %v321 = vld [vmem:[%s5 + $0x180] sm:$0xff]
  %v322 = vld [vmem:[%s5 + $0x188] sm:$0xff]
  %v323 = vld [vmem:[%s5 + $0x190] sm:$0xff]
  %v324 = vld [vmem:[%s5 + $0x198] sm:$0xff]
  %v325 = vld [vmem:[%s5 + $0x1a0] sm:$0xff]
  %v326 = vld [vmem:[%s5 + $0x1a8] sm:$0xff]
  %v327 = vld [vmem:[%s5 + $0x1b0] sm:$0xff]
  %v328 = vld [vmem:[%s5 + $0x1b8] sm:$0xff]
  %v329 = vld [vmem:[%s5 + $0x1c0] sm:$0xff]
  %v330 = vld [vmem:[%s5 + $0x1c8] sm:$0xff]
  %v331 = vld [vmem:[%s5 + $0x1d0] sm:$0xff]
  %v332 = vld [vmem:[%s5 + $0x1d8] sm:$0xff]
  %v333 = vld [vmem:[%s5 + $0x1e0] sm:$0xff]
  %v334 = vld [vmem:[%s5 + $0x1e8] sm:$0xff]
  %v335 = vld [vmem:[%s5 + $0x1f0] sm:$0xff]
  %v336 = vld [vmem:[%s5 + $0x1f8] sm:$0xff]
  %v337 = vld [vmem:[%s6] sm:$0xf]
  %v339 = vlaneseq
  %v340 = vshrl.u32 %v339, 7
  %v341 = vsub.s32 0, %v340
  %v342 = vrot.slane %v337, %v341
  %v343 = vlaneseq
  %v344 = vshrl.u32 %v343, 7
  %v345 = vsub.s32 1, %v344
  %v346 = vrot.slane %v337, %v345
  %v347 = vlaneseq
  %v348 = vshrl.u32 %v347, 7
  %v349 = vsub.s32 2, %v348
  %v350 = vrot.slane %v337, %v349
  %v351 = vlaneseq
  %v352 = vshrl.u32 %v351, 7
  %v353 = vsub.s32 3, %v352
  %v354 = vrot.slane %v337, %v353
  %v423 = vunpack.c.l.b16 %v273
  %v424 = vunpack.c.h.b16 %v273
  %v425 = vunpack.c.l.b16 %v274
  %v426 = vunpack.c.h.b16 %v274
  %v427 = vunpack.c.l.b16 %v275
  %v428 = vunpack.c.h.b16 %v275
  %v429 = vunpack.c.l.b16 %v276
  %v430 = vunpack.c.h.b16 %v276
  %v431 = vunpack.c.l.b16 %v277
  %v432 = vunpack.c.h.b16 %v277
  %v433 = vunpack.c.l.b16 %v278
  %v434 = vunpack.c.h.b16 %v278
  %v435 = vunpack.c.l.b16 %v279
  %v436 = vunpack.c.h.b16 %v279
  %v437 = vunpack.c.l.b16 %v280
  %v438 = vunpack.c.h.b16 %v280
  %v439 = vunpack.c.l.b16 %v281
  %v440 = vunpack.c.h.b16 %v281
  %v441 = vunpack.c.l.b16 %v282
  %v442 = vunpack.c.h.b16 %v282
  %v443 = vunpack.c.l.b16 %v283
  %v444 = vunpack.c.h.b16 %v283
  %v445 = vunpack.c.l.b16 %v284
  %v446 = vunpack.c.h.b16 %v284
  %v447 = vunpack.c.l.b16 %v285
  %v448 = vunpack.c.h.b16 %v285
  %v449 = vunpack.c.l.b16 %v286
  %v450 = vunpack.c.h.b16 %v286
  %v451 = vunpack.c.l.b16 %v287
  %v452 = vunpack.c.h.b16 %v287
  %v453 = vunpack.c.l.b16 %v288
  %v454 = vunpack.c.h.b16 %v288
  %v455 = vunpack.c.l.b16 %v289
  %v456 = vunpack.c.h.b16 %v289
  %v457 = vunpack.c.l.b16 %v290
  %v458 = vunpack.c.h.b16 %v290
  %v459 = vunpack.c.l.b16 %v291
  %v460 = vunpack.c.h.b16 %v291
  %v461 = vunpack.c.l.b16 %v292
  %v462 = vunpack.c.h.b16 %v292
  %v463 = vunpack.c.l.b16 %v293
  %v464 = vunpack.c.h.b16 %v293
  %v465 = vunpack.c.l.b16 %v294
  %v466 = vunpack.c.h.b16 %v294
  %v467 = vunpack.c.l.b16 %v295
  %v468 = vunpack.c.h.b16 %v295
  %v469 = vunpack.c.l.b16 %v296
  %v470 = vunpack.c.h.b16 %v296
  %v471 = vunpack.c.l.b16 %v297
  %v472 = vunpack.c.h.b16 %v297
  %v473 = vunpack.c.l.b16 %v298
  %v474 = vunpack.c.h.b16 %v298
  %v475 = vunpack.c.l.b16 %v299
  %v476 = vunpack.c.h.b16 %v299
  %v477 = vunpack.c.l.b16 %v300
  %v478 = vunpack.c.h.b16 %v300
  %v479 = vunpack.c.l.b16 %v301
  %v480 = vunpack.c.h.b16 %v301
  %v481 = vunpack.c.l.b16 %v302
  %v482 = vunpack.c.h.b16 %v302
  %v483 = vunpack.c.l.b16 %v303
  %v484 = vunpack.c.h.b16 %v303
  %v485 = vunpack.c.l.b16 %v304
  %v486 = vunpack.c.h.b16 %v304
  %v487 = vunpack.c.l.b16 %v305
  %v488 = vunpack.c.h.b16 %v305
  %v489 = vunpack.c.l.b16 %v306
  %v490 = vunpack.c.h.b16 %v306
  %v491 = vunpack.c.l.b16 %v307
  %v492 = vunpack.c.h.b16 %v307
  %v493 = vunpack.c.l.b16 %v308
  %v494 = vunpack.c.h.b16 %v308
  %v495 = vunpack.c.l.b16 %v309
  %v496 = vunpack.c.h.b16 %v309
  %v497 = vunpack.c.l.b16 %v310
  %v498 = vunpack.c.h.b16 %v310
  %v499 = vunpack.c.l.b16 %v311
  %v500 = vunpack.c.h.b16 %v311
  %v501 = vunpack.c.l.b16 %v312
  %v502 = vunpack.c.h.b16 %v312
  %v503 = vunpack.c.l.b16 %v313
  %v504 = vunpack.c.h.b16 %v313
  %v505 = vunpack.c.l.b16 %v314
  %v506 = vunpack.c.h.b16 %v314
  %v507 = vunpack.c.l.b16 %v315
  %v508 = vunpack.c.h.b16 %v315
  %v509 = vunpack.c.l.b16 %v316
  %v510 = vunpack.c.h.b16 %v316
  %v511 = vunpack.c.l.b16 %v317
  %v512 = vunpack.c.h.b16 %v317
  %v513 = vunpack.c.l.b16 %v318
  %v514 = vunpack.c.h.b16 %v318
  %v515 = vunpack.c.l.b16 %v319
  %v516 = vunpack.c.h.b16 %v319
  %v517 = vunpack.c.l.b16 %v320
  %v518 = vunpack.c.h.b16 %v320
  %v519 = vunpack.c.l.b16 %v321
  %v520 = vunpack.c.h.b16 %v321
  %v521 = vunpack.c.l.b16 %v322
  %v522 = vunpack.c.h.b16 %v322
  %v523 = vunpack.c.l.b16 %v323
  %v524 = vunpack.c.h.b16 %v323
  %v525 = vunpack.c.l.b16 %v324
  %v526 = vunpack.c.h.b16 %v324
  %v527 = vunpack.c.l.b16 %v325
  %v528 = vunpack.c.h.b16 %v325
  %v529 = vunpack.c.l.b16 %v326
  %v530 = vunpack.c.h.b16 %v326
  %v531 = vunpack.c.l.b16 %v327
  %v532 = vunpack.c.h.b16 %v327
  %v533 = vunpack.c.l.b16 %v328
  %v534 = vunpack.c.h.b16 %v328
  %v535 = vunpack.c.l.b16 %v329
  %v536 = vunpack.c.h.b16 %v329
  %v537 = vunpack.c.l.b16 %v330
  %v538 = vunpack.c.h.b16 %v330
  %v539 = vunpack.c.l.b16 %v331
  %v540 = vunpack.c.h.b16 %v331
  %v541 = vunpack.c.l.b16 %v332
  %v542 = vunpack.c.h.b16 %v332
  %v543 = vunpack.c.l.b16 %v333
  %v544 = vunpack.c.h.b16 %v333
  %v545 = vunpack.c.l.b16 %v334
  %v546 = vunpack.c.h.b16 %v334
  %v547 = vunpack.c.l.b16 %v335
  %v548 = vunpack.c.h.b16 %v335
  %v549 = vunpack.c.l.b16 %v336
  %v550 = vunpack.c.h.b16 %v336
  %v551 = vpack.c.b16 %v427, %v423
  %v552 = vpack.c.b16 %v428, %v424
  %v553 = vpack.c.b16 %v429, %v425
  %v554 = vpack.c.b16 %v430, %v426
  %v555 = vpack.c.b16 %v435, %v431
  %v556 = vpack.c.b16 %v436, %v432
  %v557 = vpack.c.b16 %v437, %v433
  %v558 = vpack.c.b16 %v438, %v434
  %v559 = vpack.c.b16 %v443, %v439
  %v560 = vpack.c.b16 %v444, %v440
  %v561 = vpack.c.b16 %v445, %v441
  %v562 = vpack.c.b16 %v446, %v442
  %v563 = vpack.c.b16 %v451, %v447
  %v564 = vpack.c.b16 %v452, %v448
  %v565 = vpack.c.b16 %v453, %v449
  %v566 = vpack.c.b16 %v454, %v450
  %v567 = vpack.c.b16 %v459, %v455
  %v568 = vpack.c.b16 %v460, %v456
  %v569 = vpack.c.b16 %v461, %v457
  %v570 = vpack.c.b16 %v462, %v458
  %v571 = vpack.c.b16 %v467, %v463
  %v572 = vpack.c.b16 %v468, %v464
  %v573 = vpack.c.b16 %v469, %v465
  %v574 = vpack.c.b16 %v470, %v466
  %v575 = vpack.c.b16 %v475, %v471
  %v576 = vpack.c.b16 %v476, %v472
  %v577 = vpack.c.b16 %v477, %v473
  %v578 = vpack.c.b16 %v478, %v474
  %v579 = vpack.c.b16 %v483, %v479
  %v580 = vpack.c.b16 %v484, %v480
  %v581 = vpack.c.b16 %v485, %v481
  %v582 = vpack.c.b16 %v486, %v482
  %v583 = vpack.c.b16 %v491, %v487
  %v584 = vpack.c.b16 %v492, %v488
  %v585 = vpack.c.b16 %v493, %v489
  %v586 = vpack.c.b16 %v494, %v490
  %v587 = vpack.c.b16 %v499, %v495
  %v588 = vpack.c.b16 %v500, %v496
  %v589 = vpack.c.b16 %v501, %v497
  %v590 = vpack.c.b16 %v502, %v498
  %v591 = vpack.c.b16 %v507, %v503
  %v592 = vpack.c.b16 %v508, %v504
  %v593 = vpack.c.b16 %v509, %v505
  %v594 = vpack.c.b16 %v510, %v506
  %v595 = vpack.c.b16 %v515, %v511
  %v596 = vpack.c.b16 %v516, %v512
  %v597 = vpack.c.b16 %v517, %v513
  %v598 = vpack.c.b16 %v518, %v514
  %v599 = vpack.c.b16 %v523, %v519
  %v600 = vpack.c.b16 %v524, %v520
  %v601 = vpack.c.b16 %v525, %v521
  %v602 = vpack.c.b16 %v526, %v522
  %v603 = vpack.c.b16 %v531, %v527
  %v604 = vpack.c.b16 %v532, %v528
  %v605 = vpack.c.b16 %v533, %v529
  %v606 = vpack.c.b16 %v534, %v530
  %v607 = vpack.c.b16 %v539, %v535
  %v608 = vpack.c.b16 %v540, %v536
  %v609 = vpack.c.b16 %v541, %v537
  %v610 = vpack.c.b16 %v542, %v538
  %v611 = vpack.c.b16 %v547, %v543
  %v612 = vpack.c.b16 %v548, %v544
  %v613 = vpack.c.b16 %v549, %v545
  %v614 = vpack.c.b16 %v550, %v546
  %679 = vmatprep.subr.bf16.mxu0 %v552
  %680 = vmatpush1.bf16.msra.mxu0 %v551
  %681 = vmatprep.subr.bf16.mxu0 %v556
  %682 = vmatpush1.bf16.msra.mxu0 %v555
  %683 = vmatprep.subr.bf16.mxu0 %v560
  %684 = vmatpush1.bf16.msra.mxu0 %v559
  %685 = vmatprep.subr.bf16.mxu0 %v564
  %686 = vmatpush1.bf16.msra.mxu0 %v563
  %687 = vmatprep.subr.bf16.mxu0 %v568
  %688 = vmatpush1.bf16.msra.mxu0 %v567
  %689 = vmatprep.subr.bf16.mxu0 %v572
  %690 = vmatpush1.bf16.msra.mxu0 %v571
  %691 = vmatprep.subr.bf16.mxu0 %v576
  %692 = vmatpush1.bf16.msra.mxu0 %v575
  %693 = vmatprep.subr.bf16.mxu0 %v580
  %694 = vmatpush1.bf16.msra.mxu0 %v579
  %695 = vmatprep.subr.bf16.mxu0 %v584
  %696 = vmatpush1.bf16.msra.mxu0 %v583
  %697 = vmatprep.subr.bf16.mxu0 %v588
  %698 = vmatpush1.bf16.msra.mxu0 %v587
  %699 = vmatprep.subr.bf16.mxu0 %v592
  %700 = vmatpush1.bf16.msra.mxu0 %v591
  %701 = vmatprep.subr.bf16.mxu0 %v596
  %702 = vmatpush1.bf16.msra.mxu0 %v595
  %703 = vmatprep.subr.bf16.mxu0 %v600
  %704 = vmatpush1.bf16.msra.mxu0 %v599
  %705 = vmatprep.subr.bf16.mxu0 %v604
  %706 = vmatpush1.bf16.msra.mxu0 %v603
  %707 = vmatprep.subr.bf16.mxu0 %v608
  %708 = vmatpush1.bf16.msra.mxu0 %v607
  %709 = vmatprep.subr.bf16.mxu0 %v612
  %710 = vmatpush1.bf16.msra.mxu0 %v611
  %711 = vmatprep.mubr.bf16.mxu0 %v272
  %712 = vmatmul.mubr.bf16.gmra.mrb[0].mxu0 %v271
  %v713 = vpop.f32.mrb[0].mxu0
  %v714 = vadd.f32 %v342, %v713
  %v715 = vpop.f32.mrb[0].mxu0
  %v716 = vadd.f32 %v346, %v715
  %v717 = vpop.f32.mrb[0].mxu0
  %v718 = vpop.f32.mrb[0].mxu0
  %719 = vdwg.mxu0
  %720 = vmatprep.subr.bf16.mxu0 %v554
  %721 = vmatpush1.bf16.msra.mxu0 %v553
  %722 = vmatprep.subr.bf16.mxu0 %v558
  %723 = vmatpush1.bf16.msra.mxu0 %v557
  %724 = vmatprep.subr.bf16.mxu0 %v562
  %725 = vmatpush1.bf16.msra.mxu0 %v561
  %726 = vmatprep.subr.bf16.mxu0 %v566
  %727 = vmatpush1.bf16.msra.mxu0 %v565
  %728 = vmatprep.subr.bf16.mxu0 %v570
  %729 = vmatpush1.bf16.msra.mxu0 %v569
  %730 = vmatprep.subr.bf16.mxu0 %v574
  %731 = vmatpush1.bf16.msra.mxu0 %v573
  %732 = vmatprep.subr.bf16.mxu0 %v578
  %733 = vmatpush1.bf16.msra.mxu0 %v577
  %734 = vmatprep.subr.bf16.mxu0 %v582
  %735 = vmatpush1.bf16.msra.mxu0 %v581
  %736 = vmatprep.subr.bf16.mxu0 %v586
  %737 = vmatpush1.bf16.msra.mxu0 %v585
  %738 = vmatprep.subr.bf16.mxu0 %v590
  %739 = vmatpush1.bf16.msra.mxu0 %v589
  %740 = vmatprep.subr.bf16.mxu0 %v594
  %741 = vmatpush1.bf16.msra.mxu0 %v593
  %742 = vmatprep.subr.bf16.mxu0 %v598
  %743 = vmatpush1.bf16.msra.mxu0 %v597
  %744 = vmatprep.subr.bf16.mxu0 %v602
  %745 = vmatpush1.bf16.msra.mxu0 %v601
  %746 = vmatprep.subr.bf16.mxu0 %v606
  %747 = vmatpush1.bf16.msra.mxu0 %v605
  %748 = vmatprep.subr.bf16.mxu0 %v610
  %749 = vmatpush1.bf16.msra.mxu0 %v609
  %750 = vmatprep.subr.bf16.mxu0 %v614
  %751 = vmatpush1.bf16.msra.mxu0 %v613
  %752 = vmatprep.mubr.bf16.mxu0 %v272
  %753 = vmatmul.mubr.bf16.gmra.mrb[0].mxu0 %v271
  %v754 = vpop.f32.mrb[0].mxu0
  %v755 = vadd.f32 %v350, %v754
  %v756 = vpop.f32.mrb[0].mxu0
  %v757 = vadd.f32 %v354, %v756
  %v758 = vpop.f32.mrb[0].mxu0
  %v759 = vpop.f32.mrb[0].mxu0
  %760 = vdwg.mxu0
  %v761 = vmax.f32 %v714, 0.0
  %v762 = vmax.f32 %v716, 0.0
  %v763 = vmax.f32 %v755, 0.0
  %v764 = vmax.f32 %v757, 0.0
  %v765 = vpack.c.bf16 %v761, %v761
  %v766 = vpack.c.bf16 %v762, %v762
  %v767 = vpack.c.bf16 %v763, %v763
  %v768 = vpack.c.bf16 %v764, %v764
  %v769 = vld [vmem:[%s7] sm:$0xff]
  %v770 = vld [vmem:[%s7 + $0x8] sm:$0xff]
  %v771 = vld [vmem:[%s7 + $0x10] sm:$0xff]
  %v772 = vld [vmem:[%s7 + $0x18] sm:$0xf]
  %v773 = vld [vmem:[%s7 + $0x1c] sm:$0xff]
  %v774 = vld [vmem:[%s7 + $0x24] sm:$0xff]
  %v775 = vld [vmem:[%s7 + $0x2c] sm:$0xff]
  %v776 = vld [vmem:[%s7 + $0x34] sm:$0xf]
  %v777 = vld [vmem:[%s7 + $0x38] sm:$0xff]
  %v778 = vld [vmem:[%s7 + $0x40] sm:$0xff]
  %v779 = vld [vmem:[%s7 + $0x48] sm:$0xff]
  %v780 = vld [vmem:[%s7 + $0x50] sm:$0xf]
  %v781 = vld [vmem:[%s7 + $0x54] sm:$0xff]
  %v782 = vld [vmem:[%s7 + $0x5c] sm:$0xff]
  %v783 = vld [vmem:[%s7 + $0x64] sm:$0xff]
  %v784 = vld [vmem:[%s7 + $0x6c] sm:$0xf]
  %v785 = vld [vmem:[%s7 + $0x70] sm:$0xff]
  %v786 = vld [vmem:[%s7 + $0x78] sm:$0xff]
  %v787 = vld [vmem:[%s7 + $0x80] sm:$0xff]
  %v788 = vld [vmem:[%s7 + $0x88] sm:$0xf]
  %v789 = vld [vmem:[%s7 + $0x8c] sm:$0xff]
  %v790 = vld [vmem:[%s7 + $0x94] sm:$0xff]
  %v791 = vld [vmem:[%s7 + $0x9c] sm:$0xff]
  %v792 = vld [vmem:[%s7 + $0xa4] sm:$0xf]
  %v793 = vld [vmem:[%s7 + $0xa8] sm:$0xff]
  %v794 = vld [vmem:[%s7 + $0xb0] sm:$0xff]
  %v795 = vld [vmem:[%s7 + $0xb8] sm:$0xff]
  %v796 = vld [vmem:[%s7 + $0xc0] sm:$0xf]
  %v797 = vld [vmem:[%s7 + $0xc4] sm:$0xff]
  %v798 = vld [vmem:[%s7 + $0xcc] sm:$0xff]
  %v799 = vld [vmem:[%s7 + $0xd4] sm:$0xff]
  %v800 = vld [vmem:[%s7 + $0xdc] sm:$0xf]
  %v801 = vld [vmem:[%s7 + $0xe0] sm:$0xff]
  %v802 = vld [vmem:[%s7 + $0xe8] sm:$0xff]
  %v803 = vld [vmem:[%s7 + $0xf0] sm:$0xff]
  %v804 = vld [vmem:[%s7 + $0xf8] sm:$0xf]
  %v805 = vld [vmem:[%s7 + $0xfc] sm:$0xff]
  %v806 = vld [vmem:[%s7 + $0x104] sm:$0xff]
  %v807 = vld [vmem:[%s7 + $0x10c] sm:$0xff]
  %v808 = vld [vmem:[%s7 + $0x114] sm:$0xf]
  %v809 = vld [vmem:[%s7 + $0x118] sm:$0xff]
  %v810 = vld [vmem:[%s7 + $0x120] sm:$0xff]
  %v811 = vld [vmem:[%s7 + $0x128] sm:$0xff]
  %v812 = vld [vmem:[%s7 + $0x130] sm:$0xf]
  %v813 = vld [vmem:[%s7 + $0x134] sm:$0xff]
  %v814 = vld [vmem:[%s7 + $0x13c] sm:$0xff]
  %v815 = vld [vmem:[%s7 + $0x144] sm:$0xff]
  %v816 = vld [vmem:[%s7 + $0x14c] sm:$0xf]
  %v817 = vld [vmem:[%s7 + $0x150] sm:$0xff]
  %v818 = vld [vmem:[%s7 + $0x158] sm:$0xff]
  %v819 = vld [vmem:[%s7 + $0x160] sm:$0xff]
  %v820 = vld [vmem:[%s7 + $0x168] sm:$0xf]
  %v821 = vld [vmem:[%s7 + $0x16c] sm:$0xff]
  %v822 = vld [vmem:[%s7 + $0x174] sm:$0xff]
  %v823 = vld [vmem:[%s7 + $0x17c] sm:$0xff]
  %v824 = vld [vmem:[%s7 + $0x184] sm:$0xf]
  %v825 = vld [vmem:[%s7 + $0x188] sm:$0xff]
  %v826 = vld [vmem:[%s7 + $0x190] sm:$0xff]
  %v827 = vld [vmem:[%s7 + $0x198] sm:$0xff]
  %v828 = vld [vmem:[%s7 + $0x1a0] sm:$0xf]
  %v829 = vld [vmem:[%s7 + $0x1a4] sm:$0xff]
  %v830 = vld [vmem:[%s7 + $0x1ac] sm:$0xff]
  %v831 = vld [vmem:[%s7 + $0x1b4] sm:$0xff]
  %v832 = vld [vmem:[%s7 + $0x1bc] sm:$0xf]
  %v833 = vld [vmem:[%s7 + $0x1c0] sm:$0xff]
  %v834 = vld [vmem:[%s7 + $0x1c8] sm:$0xff]
  %v835 = vld [vmem:[%s7 + $0x1d0] sm:$0xff]
  %v836 = vld [vmem:[%s7 + $0x1d8] sm:$0xf]
  %v837 = vld [vmem:[%s7 + $0x1dc] sm:$0xff]
  %v838 = vld [vmem:[%s7 + $0x1e4] sm:$0xff]
  %v839 = vld [vmem:[%s7 + $0x1ec] sm:$0xff]
  %v840 = vld [vmem:[%s7 + $0x1f4] sm:$0xf]
  %v841 = vld [vmem:[%s7 + $0x1f8] sm:$0xff]
  %v842 = vld [vmem:[%s7 + $0x200] sm:$0xff]
  %v843 = vld [vmem:[%s7 + $0x208] sm:$0xff]
  %v844 = vld [vmem:[%s7 + $0x210] sm:$0xf]
  %v845 = vld [vmem:[%s7 + $0x214] sm:$0xff]
  %v846 = vld [vmem:[%s7 + $0x21c] sm:$0xff]
  %v847 = vld [vmem:[%s7 + $0x224] sm:$0xff]
  %v848 = vld [vmem:[%s7 + $0x22c] sm:$0xf]
  %v849 = vld [vmem:[%s7 + $0x230] sm:$0xff]
  %v850 = vld [vmem:[%s7 + $0x238] sm:$0xff]
  %v851 = vld [vmem:[%s7 + $0x240] sm:$0xff]
  %v852 = vld [vmem:[%s7 + $0x248] sm:$0xf]
  %v853 = vld [vmem:[%s7 + $0x24c] sm:$0xff]
  %v854 = vld [vmem:[%s7 + $0x254] sm:$0xff]
  %v855 = vld [vmem:[%s7 + $0x25c] sm:$0xff]
  %v856 = vld [vmem:[%s7 + $0x264] sm:$0xf]
  %v857 = vld [vmem:[%s7 + $0x268] sm:$0xff]
  %v858 = vld [vmem:[%s7 + $0x270] sm:$0xff]
  %v859 = vld [vmem:[%s7 + $0x278] sm:$0xff]
  %v860 = vld [vmem:[%s7 + $0x280] sm:$0xf]
  %v861 = vld [vmem:[%s7 + $0x284] sm:$0xff]
  %v862 = vld [vmem:[%s7 + $0x28c] sm:$0xff]
  %v863 = vld [vmem:[%s7 + $0x294] sm:$0xff]
  %v864 = vld [vmem:[%s7 + $0x29c] sm:$0xf]
  %v865 = vld [vmem:[%s7 + $0x2a0] sm:$0xff]
  %v866 = vld [vmem:[%s7 + $0x2a8] sm:$0xff]
  %v867 = vld [vmem:[%s7 + $0x2b0] sm:$0xff]
  %v868 = vld [vmem:[%s7 + $0x2b8] sm:$0xf]
  %v869 = vld [vmem:[%s7 + $0x2bc] sm:$0xff]
  %v870 = vld [vmem:[%s7 + $0x2c4] sm:$0xff]
  %v871 = vld [vmem:[%s7 + $0x2cc] sm:$0xff]
  %v872 = vld [vmem:[%s7 + $0x2d4] sm:$0xf]
  %v873 = vld [vmem:[%s7 + $0x2d8] sm:$0xff]
  %v874 = vld [vmem:[%s7 + $0x2e0] sm:$0xff]
  %v875 = vld [vmem:[%s7 + $0x2e8] sm:$0xff]
  %v876 = vld [vmem:[%s7 + $0x2f0] sm:$0xf]
  %v877 = vld [vmem:[%s7 + $0x2f4] sm:$0xff]
  %v878 = vld [vmem:[%s7 + $0x2fc] sm:$0xff]
  %v879 = vld [vmem:[%s7 + $0x304] sm:$0xff]
  %v880 = vld [vmem:[%s7 + $0x30c] sm:$0xf]
  %v881 = vld [vmem:[%s7 + $0x310] sm:$0xff]
  %v882 = vld [vmem:[%s7 + $0x318] sm:$0xff]
  %v883 = vld [vmem:[%s7 + $0x320] sm:$0xff]
  %v884 = vld [vmem:[%s7 + $0x328] sm:$0xf]
  %v885 = vld [vmem:[%s7 + $0x32c] sm:$0xff]
  %v886 = vld [vmem:[%s7 + $0x334] sm:$0xff]
  %v887 = vld [vmem:[%s7 + $0x33c] sm:$0xff]
  %v888 = vld [vmem:[%s7 + $0x344] sm:$0xf]
  %v889 = vld [vmem:[%s7 + $0x348] sm:$0xff]
  %v890 = vld [vmem:[%s7 + $0x350] sm:$0xff]
  %v891 = vld [vmem:[%s7 + $0x358] sm:$0xff]
  %v892 = vld [vmem:[%s7 + $0x360] sm:$0xf]
  %v893 = vld [vmem:[%s7 + $0x364] sm:$0xff]
  %v894 = vld [vmem:[%s7 + $0x36c] sm:$0xff]
  %v895 = vld [vmem:[%s7 + $0x374] sm:$0xff]
  %v896 = vld [vmem:[%s7 + $0x37c] sm:$0xf]
  %v897 = vld [vmem:[%s7 + $0x380] sm:$0xff]
  %v898 = vld [vmem:[%s7 + $0x388] sm:$0xff]
  %v899 = vld [vmem:[%s7 + $0x390] sm:$0xff]
  %v900 = vld [vmem:[%s7 + $0x398] sm:$0xf]
  %v901 = vld [vmem:[%s7 + $0x39c] sm:$0xff]
  %v902 = vld [vmem:[%s7 + $0x3a4] sm:$0xff]
  %v903 = vld [vmem:[%s7 + $0x3ac] sm:$0xff]
  %v904 = vld [vmem:[%s7 + $0x3b4] sm:$0xf]
  %v905 = vld [vmem:[%s7 + $0x3b8] sm:$0xff]
  %v906 = vld [vmem:[%s7 + $0x3c0] sm:$0xff]
  %v907 = vld [vmem:[%s7 + $0x3c8] sm:$0xff]
  %v908 = vld [vmem:[%s7 + $0x3d0] sm:$0xf]
  %v909 = vld [vmem:[%s7 + $0x3d4] sm:$0xff]
  %v910 = vld [vmem:[%s7 + $0x3dc] sm:$0xff]
  %v911 = vld [vmem:[%s7 + $0x3e4] sm:$0xff]
  %v912 = vld [vmem:[%s7 + $0x3ec] sm:$0xf]
  %v913 = vld [vmem:[%s7 + $0x3f0] sm:$0xff]
  %v914 = vld [vmem:[%s7 + $0x3f8] sm:$0xff]
  %v915 = vld [vmem:[%s7 + $0x400] sm:$0xff]
  %v916 = vld [vmem:[%s7 + $0x408] sm:$0xf]
  %v917 = vld [vmem:[%s7 + $0x40c] sm:$0xff]
  %v918 = vld [vmem:[%s7 + $0x414] sm:$0xff]
  %v919 = vld [vmem:[%s7 + $0x41c] sm:$0xff]
  %v920 = vld [vmem:[%s7 + $0x424] sm:$0xf]
  %v921 = vld [vmem:[%s7 + $0x428] sm:$0xff]
  %v922 = vld [vmem:[%s7 + $0x430] sm:$0xff]
  %v923 = vld [vmem:[%s7 + $0x438] sm:$0xff]
  %v924 = vld [vmem:[%s7 + $0x440] sm:$0xf]
  %v925 = vld [vmem:[%s7 + $0x444] sm:$0xff]
  %v926 = vld [vmem:[%s7 + $0x44c] sm:$0xff]
  %v927 = vld [vmem:[%s7 + $0x454] sm:$0xff]
  %v928 = vld [vmem:[%s7 + $0x45c] sm:$0xf]
  %v929 = vld [vmem:[%s7 + $0x460] sm:$0xff]
  %v930 = vld [vmem:[%s7 + $0x468] sm:$0xff]
  %v931 = vld [vmem:[%s7 + $0x470] sm:$0xff]
  %v932 = vld [vmem:[%s7 + $0x478] sm:$0xf]
  %v933 = vld [vmem:[%s7 + $0x47c] sm:$0xff]
  %v934 = vld [vmem:[%s7 + $0x484] sm:$0xff]
  %v935 = vld [vmem:[%s7 + $0x48c] sm:$0xff]
  %v936 = vld [vmem:[%s7 + $0x494] sm:$0xf]
  %v937 = vld [vmem:[%s7 + $0x498] sm:$0xff]
  %v938 = vld [vmem:[%s7 + $0x4a0] sm:$0xff]
  %v939 = vld [vmem:[%s7 + $0x4a8] sm:$0xff]
  %v940 = vld [vmem:[%s7 + $0x4b0] sm:$0xf]
  %v941 = vld [vmem:[%s7 + $0x4b4] sm:$0xff]
  %v942 = vld [vmem:[%s7 + $0x4bc] sm:$0xff]
  %v943 = vld [vmem:[%s7 + $0x4c4] sm:$0xff]
  %v944 = vld [vmem:[%s7 + $0x4cc] sm:$0xf]
  %v945 = vld [vmem:[%s7 + $0x4d0] sm:$0xff]
  %v946 = vld [vmem:[%s7 + $0x4d8] sm:$0xff]
  %v947 = vld [vmem:[%s7 + $0x4e0] sm:$0xff]
  %v948 = vld [vmem:[%s7 + $0x4e8] sm:$0xf]
  %v949 = vld [vmem:[%s7 + $0x4ec] sm:$0xff]
  %v950 = vld [vmem:[%s7 + $0x4f4] sm:$0xff]
  %v951 = vld [vmem:[%s7 + $0x4fc] sm:$0xff]
  %v952 = vld [vmem:[%s7 + $0x504] sm:$0xf]
  %v953 = vld [vmem:[%s7 + $0x508] sm:$0xff]
  %v954 = vld [vmem:[%s7 + $0x510] sm:$0xff]
  %v955 = vld [vmem:[%s7 + $0x518] sm:$0xff]
  %v956 = vld [vmem:[%s7 + $0x520] sm:$0xf]
  %v957 = vld [vmem:[%s7 + $0x524] sm:$0xff]
  %v958 = vld [vmem:[%s7 + $0x52c] sm:$0xff]
  %v959 = vld [vmem:[%s7 + $0x534] sm:$0xff]
  %v960 = vld [vmem:[%s7 + $0x53c] sm:$0xf]
  %v961 = vld [vmem:[%s7 + $0x540] sm:$0xff]
  %v962 = vld [vmem:[%s7 + $0x548] sm:$0xff]
  %v963 = vld [vmem:[%s7 + $0x550] sm:$0xff]
  %v964 = vld [vmem:[%s7 + $0x558] sm:$0xf]
  %v965 = vld [vmem:[%s7 + $0x55c] sm:$0xff]
  %v966 = vld [vmem:[%s7 + $0x564] sm:$0xff]
  %v967 = vld [vmem:[%s7 + $0x56c] sm:$0xff]
  %v968 = vld [vmem:[%s7 + $0x574] sm:$0xf]
  %v969 = vld [vmem:[%s7 + $0x578] sm:$0xff]
  %v970 = vld [vmem:[%s7 + $0x580] sm:$0xff]
  %v971 = vld [vmem:[%s7 + $0x588] sm:$0xff]
  %v972 = vld [vmem:[%s7 + $0x590] sm:$0xf]
  %v973 = vld [vmem:[%s7 + $0x594] sm:$0xff]
  %v974 = vld [vmem:[%s7 + $0x59c] sm:$0xff]
  %v975 = vld [vmem:[%s7 + $0x5a4] sm:$0xff]
  %v976 = vld [vmem:[%s7 + $0x5ac] sm:$0xf]
  %v977 = vld [vmem:[%s7 + $0x5b0] sm:$0xff]
  %v978 = vld [vmem:[%s7 + $0x5b8] sm:$0xff]
  %v979 = vld [vmem:[%s7 + $0x5c0] sm:$0xff]
  %v980 = vld [vmem:[%s7 + $0x5c8] sm:$0xf]
  %v981 = vld [vmem:[%s7 + $0x5cc] sm:$0xff]
  %v982 = vld [vmem:[%s7 + $0x5d4] sm:$0xff]
  %v983 = vld [vmem:[%s7 + $0x5dc] sm:$0xff]
  %v984 = vld [vmem:[%s7 + $0x5e4] sm:$0xf]
  %v985 = vld [vmem:[%s7 + $0x5e8] sm:$0xff]
  %v986 = vld [vmem:[%s7 + $0x5f0] sm:$0xff]
  %v987 = vld [vmem:[%s7 + $0x5f8] sm:$0xff]
  %v988 = vld [vmem:[%s7 + $0x600] sm:$0xf]
  %v989 = vld [vmem:[%s7 + $0x604] sm:$0xff]
  %v990 = vld [vmem:[%s7 + $0x60c] sm:$0xff]
  %v991 = vld [vmem:[%s7 + $0x614] sm:$0xff]
  %v992 = vld [vmem:[%s7 + $0x61c] sm:$0xf]
  %v993 = vld [vmem:[%s7 + $0x620] sm:$0xff]
  %v994 = vld [vmem:[%s7 + $0x628] sm:$0xff]
  %v995 = vld [vmem:[%s7 + $0x630] sm:$0xff]
  %v996 = vld [vmem:[%s7 + $0x638] sm:$0xf]
  %v997 = vld [vmem:[%s7 + $0x63c] sm:$0xff]
  %v998 = vld [vmem:[%s7 + $0x644] sm:$0xff]
  %v999 = vld [vmem:[%s7 + $0x64c] sm:$0xff]
  %v1000 = vld [vmem:[%s7 + $0x654] sm:$0xf]
  %v1001 = vld [vmem:[%s7 + $0x658] sm:$0xff]
  %v1002 = vld [vmem:[%s7 + $0x660] sm:$0xff]
  %v1003 = vld [vmem:[%s7 + $0x668] sm:$0xff]
  %v1004 = vld [vmem:[%s7 + $0x670] sm:$0xf]
  %v1005 = vld [vmem:[%s7 + $0x674] sm:$0xff]
  %v1006 = vld [vmem:[%s7 + $0x67c] sm:$0xff]
  %v1007 = vld [vmem:[%s7 + $0x684] sm:$0xff]
  %v1008 = vld [vmem:[%s7 + $0x68c] sm:$0xf]
  %v1009 = vld [vmem:[%s7 + $0x690] sm:$0xff]
  %v1010 = vld [vmem:[%s7 + $0x698] sm:$0xff]
  %v1011 = vld [vmem:[%s7 + $0x6a0] sm:$0xff]
  %v1012 = vld [vmem:[%s7 + $0x6a8] sm:$0xf]
  %v1013 = vld [vmem:[%s7 + $0x6ac] sm:$0xff]
  %v1014 = vld [vmem:[%s7 + $0x6b4] sm:$0xff]
  %v1015 = vld [vmem:[%s7 + $0x6bc] sm:$0xff]
  %v1016 = vld [vmem:[%s7 + $0x6c4] sm:$0xf]
  %v1017 = vld [vmem:[%s7 + $0x6c8] sm:$0xff]
  %v1018 = vld [vmem:[%s7 + $0x6d0] sm:$0xff]
  %v1019 = vld [vmem:[%s7 + $0x6d8] sm:$0xff]
  %v1020 = vld [vmem:[%s7 + $0x6e0] sm:$0xf]
  %v1021 = vld [vmem:[%s7 + $0x6e4] sm:$0xff]
  %v1022 = vld [vmem:[%s7 + $0x6ec] sm:$0xff]
  %v1023 = vld [vmem:[%s7 + $0x6f4] sm:$0xff]
  %v1024 = vld [vmem:[%s7 + $0x6fc] sm:$0xf]
  %v1025 = vld [vmem:[%s8] sm:$0x7f]
  %v1027 = vlaneseq
  %v1028 = vshrl.u32 %v1027, 7
  %v1029 = vsub.s32 0, %v1028
  %v1030 = vrot.slane %v1025, %v1029
  %v1031 = vlaneseq
  %v1032 = vshrl.u32 %v1031, 7
  %v1033 = vsub.s32 1, %v1032
  %v1034 = vrot.slane %v1025, %v1033
  %v1035 = vlaneseq
  %v1036 = vshrl.u32 %v1035, 7
  %v1037 = vsub.s32 2, %v1036
  %v1038 = vrot.slane %v1025, %v1037
  %v1039 = vlaneseq
  %v1040 = vshrl.u32 %v1039, 7
  %v1041 = vsub.s32 3, %v1040
  %v1042 = vrot.slane %v1025, %v1041
  %v1043 = vlaneseq
  %v1044 = vshrl.u32 %v1043, 7
  %v1045 = vsub.s32 4, %v1044
  %v1046 = vrot.slane %v1025, %v1045
  %v1047 = vlaneseq
  %v1048 = vshrl.u32 %v1047, 7
  %v1049 = vsub.s32 5, %v1048
  %v1050 = vrot.slane %v1025, %v1049
  %v1051 = vlaneseq
  %v1052 = vshrl.u32 %v1051, 7
  %v1053 = vsub.s32 6, %v1052
  %v1054 = vrot.slane %v1025, %v1053
  %v1318 = vunpack.c.l.b16 %v769
  %v1319 = vunpack.c.h.b16 %v769
  %v1320 = vunpack.c.l.b16 %v770
  %v1321 = vunpack.c.h.b16 %v770
  %v1322 = vunpack.c.l.b16 %v771
  %v1323 = vunpack.c.h.b16 %v771
  %v1324 = vunpack.c.l.b16 %v772
  %v1325 = vunpack.c.l.b16 %v773
  %v1326 = vunpack.c.h.b16 %v773
  %v1327 = vunpack.c.l.b16 %v774
  %v1328 = vunpack.c.h.b16 %v774
  %v1329 = vunpack.c.l.b16 %v775
  %v1330 = vunpack.c.h.b16 %v775
  %v1331 = vunpack.c.l.b16 %v776
  %v1332 = vunpack.c.l.b16 %v777
  %v1333 = vunpack.c.h.b16 %v777
  %v1334 = vunpack.c.l.b16 %v778
  %v1335 = vunpack.c.h.b16 %v778
  %v1336 = vunpack.c.l.b16 %v779
  %v1337 = vunpack.c.h.b16 %v779
  %v1338 = vunpack.c.l.b16 %v780
  %v1339 = vunpack.c.l.b16 %v781
  %v1340 = vunpack.c.h.b16 %v781
  %v1341 = vunpack.c.l.b16 %v782
  %v1342 = vunpack.c.h.b16 %v782
  %v1343 = vunpack.c.l.b16 %v783
  %v1344 = vunpack.c.h.b16 %v783
  %v1345 = vunpack.c.l.b16 %v784
  %v1346 = vunpack.c.l.b16 %v785
  %v1347 = vunpack.c.h.b16 %v785
  %v1348 = vunpack.c.l.b16 %v786
  %v1349 = vunpack.c.h.b16 %v786
  %v1350 = vunpack.c.l.b16 %v787
  %v1351 = vunpack.c.h.b16 %v787
  %v1352 = vunpack.c.l.b16 %v788
  %v1353 = vunpack.c.l.b16 %v789
  %v1354 = vunpack.c.h.b16 %v789
  %v1355 = vunpack.c.l.b16 %v790
  %v1356 = vunpack.c.h.b16 %v790
  %v1357 = vunpack.c.l.b16 %v791
  %v1358 = vunpack.c.h.b16 %v791
  %v1359 = vunpack.c.l.b16 %v792
  %v1360 = vunpack.c.l.b16 %v793
  %v1361 = vunpack.c.h.b16 %v793
  %v1362 = vunpack.c.l.b16 %v794
  %v1363 = vunpack.c.h.b16 %v794
  %v1364 = vunpack.c.l.b16 %v795
  %v1365 = vunpack.c.h.b16 %v795
  %v1366 = vunpack.c.l.b16 %v796
  %v1367 = vunpack.c.l.b16 %v797
  %v1368 = vunpack.c.h.b16 %v797
  %v1369 = vunpack.c.l.b16 %v798
  %v1370 = vunpack.c.h.b16 %v798
  %v1371 = vunpack.c.l.b16 %v799
  %v1372 = vunpack.c.h.b16 %v799
  %v1373 = vunpack.c.l.b16 %v800
  %v1374 = vunpack.c.l.b16 %v801
  %v1375 = vunpack.c.h.b16 %v801
  %v1376 = vunpack.c.l.b16 %v802
  %v1377 = vunpack.c.h.b16 %v802
  %v1378 = vunpack.c.l.b16 %v803
  %v1379 = vunpack.c.h.b16 %v803
  %v1380 = vunpack.c.l.b16 %v804
  %v1381 = vunpack.c.l.b16 %v805
  %v1382 = vunpack.c.h.b16 %v805
  %v1383 = vunpack.c.l.b16 %v806
  %v1384 = vunpack.c.h.b16 %v806
  %v1385 = vunpack.c.l.b16 %v807
  %v1386 = vunpack.c.h.b16 %v807
  %v1387 = vunpack.c.l.b16 %v808
  %v1388 = vunpack.c.l.b16 %v809
  %v1389 = vunpack.c.h.b16 %v809
  %v1390 = vunpack.c.l.b16 %v810
  %v1391 = vunpack.c.h.b16 %v810
  %v1392 = vunpack.c.l.b16 %v811
  %v1393 = vunpack.c.h.b16 %v811
  %v1394 = vunpack.c.l.b16 %v812
  %v1395 = vunpack.c.l.b16 %v813
  %v1396 = vunpack.c.h.b16 %v813
  %v1397 = vunpack.c.l.b16 %v814
  %v1398 = vunpack.c.h.b16 %v814
  %v1399 = vunpack.c.l.b16 %v815
  %v1400 = vunpack.c.h.b16 %v815
  %v1401 = vunpack.c.l.b16 %v816
  %v1402 = vunpack.c.l.b16 %v817
  %v1403 = vunpack.c.h.b16 %v817
  %v1404 = vunpack.c.l.b16 %v818
  %v1405 = vunpack.c.h.b16 %v818
  %v1406 = vunpack.c.l.b16 %v819
  %v1407 = vunpack.c.h.b16 %v819
  %v1408 = vunpack.c.l.b16 %v820
  %v1409 = vunpack.c.l.b16 %v821
  %v1410 = vunpack.c.h.b16 %v821
  %v1411 = vunpack.c.l.b16 %v822
  %v1412 = vunpack.c.h.b16 %v822
  %v1413 = vunpack.c.l.b16 %v823
  %v1414 = vunpack.c.h.b16 %v823
  %v1415 = vunpack.c.l.b16 %v824
  %v1416 = vunpack.c.l.b16 %v825
  %v1417 = vunpack.c.h.b16 %v825
  %v1418 = vunpack.c.l.b16 %v826
  %v1419 = vunpack.c.h.b16 %v826
  %v1420 = vunpack.c.l.b16 %v827
  %v1421 = vunpack.c.h.b16 %v827
  %v1422 = vunpack.c.l.b16 %v828
  %v1423 = vunpack.c.l.b16 %v829
  %v1424 = vunpack.c.h.b16 %v829
  %v1425 = vunpack.c.l.b16 %v830
  %v1426 = vunpack.c.h.b16 %v830
  %v1427 = vunpack.c.l.b16 %v831
  %v1428 = vunpack.c.h.b16 %v831
  %v1429 = vunpack.c.l.b16 %v832
  %v1430 = vunpack.c.l.b16 %v833
  %v1431 = vunpack.c.h.b16 %v833
  %v1432 = vunpack.c.l.b16 %v834
  %v1433 = vunpack.c.h.b16 %v834
  %v1434 = vunpack.c.l.b16 %v835
  %v1435 = vunpack.c.h.b16 %v835
  %v1436 = vunpack.c.l.b16 %v836
  %v1437 = vunpack.c.l.b16 %v837
  %v1438 = vunpack.c.h.b16 %v837
  %v1439 = vunpack.c.l.b16 %v838
  %v1440 = vunpack.c.h.b16 %v838
  %v1441 = vunpack.c.l.b16 %v839
  %v1442 = vunpack.c.h.b16 %v839
  %v1443 = vunpack.c.l.b16 %v840
  %v1444 = vunpack.c.l.b16 %v841
  %v1445 = vunpack.c.h.b16 %v841
  %v1446 = vunpack.c.l.b16 %v842
  %v1447 = vunpack.c.h.b16 %v842
  %v1448 = vunpack.c.l.b16 %v843
  %v1449 = vunpack.c.h.b16 %v843
  %v1450 = vunpack.c.l.b16 %v844
  %v1451 = vunpack.c.l.b16 %v845
  %v1452 = vunpack.c.h.b16 %v845
  %v1453 = vunpack.c.l.b16 %v846
  %v1454 = vunpack.c.h.b16 %v846
  %v1455 = vunpack.c.l.b16 %v847
  %v1456 = vunpack.c.h.b16 %v847
  %v1457 = vunpack.c.l.b16 %v848
  %v1458 = vunpack.c.l.b16 %v849
  %v1459 = vunpack.c.h.b16 %v849
  %v1460 = vunpack.c.l.b16 %v850
  %v1461 = vunpack.c.h.b16 %v850
  %v1462 = vunpack.c.l.b16 %v851
  %v1463 = vunpack.c.h.b16 %v851
  %v1464 = vunpack.c.l.b16 %v852
  %v1465 = vunpack.c.l.b16 %v853
  %v1466 = vunpack.c.h.b16 %v853
  %v1467 = vunpack.c.l.b16 %v854
  %v1468 = vunpack.c.h.b16 %v854
  %v1469 = vunpack.c.l.b16 %v855
  %v1470 = vunpack.c.h.b16 %v855
  %v1471 = vunpack.c.l.b16 %v856
  %v1472 = vunpack.c.l.b16 %v857
  %v1473 = vunpack.c.h.b16 %v857
  %v1474 = vunpack.c.l.b16 %v858
  %v1475 = vunpack.c.h.b16 %v858
  %v1476 = vunpack.c.l.b16 %v859
  %v1477 = vunpack.c.h.b16 %v859
  %v1478 = vunpack.c.l.b16 %v860
  %v1479 = vunpack.c.l.b16 %v861
  %v1480 = vunpack.c.h.b16 %v861
  %v1481 = vunpack.c.l.b16 %v862
  %v1482 = vunpack.c.h.b16 %v862
  %v1483 = vunpack.c.l.b16 %v863
  %v1484 = vunpack.c.h.b16 %v863
  %v1485 = vunpack.c.l.b16 %v864
  %v1486 = vunpack.c.l.b16 %v865
  %v1487 = vunpack.c.h.b16 %v865
  %v1488 = vunpack.c.l.b16 %v866
  %v1489 = vunpack.c.h.b16 %v866
  %v1490 = vunpack.c.l.b16 %v867
  %v1491 = vunpack.c.h.b16 %v867
  %v1492 = vunpack.c.l.b16 %v868
  %v1493 = vunpack.c.l.b16 %v869
  %v1494 = vunpack.c.h.b16 %v869
  %v1495 = vunpack.c.l.b16 %v870
  %v1496 = vunpack.c.h.b16 %v870
  %v1497 = vunpack.c.l.b16 %v871
  %v1498 = vunpack.c.h.b16 %v871
  %v1499 = vunpack.c.l.b16 %v872
  %v1500 = vunpack.c.l.b16 %v873
  %v1501 = vunpack.c.h.b16 %v873
  %v1502 = vunpack.c.l.b16 %v874
  %v1503 = vunpack.c.h.b16 %v874
  %v1504 = vunpack.c.l.b16 %v875
  %v1505 = vunpack.c.h.b16 %v875
  %v1506 = vunpack.c.l.b16 %v876
  %v1507 = vunpack.c.l.b16 %v877
  %v1508 = vunpack.c.h.b16 %v877
  %v1509 = vunpack.c.l.b16 %v878
  %v1510 = vunpack.c.h.b16 %v878
  %v1511 = vunpack.c.l.b16 %v879
  %v1512 = vunpack.c.h.b16 %v879
  %v1513 = vunpack.c.l.b16 %v880
  %v1514 = vunpack.c.l.b16 %v881
  %v1515 = vunpack.c.h.b16 %v881
  %v1516 = vunpack.c.l.b16 %v882
  %v1517 = vunpack.c.h.b16 %v882
  %v1518 = vunpack.c.l.b16 %v883
  %v1519 = vunpack.c.h.b16 %v883
  %v1520 = vunpack.c.l.b16 %v884
  %v1521 = vunpack.c.l.b16 %v885
  %v1522 = vunpack.c.h.b16 %v885
  %v1523 = vunpack.c.l.b16 %v886
  %v1524 = vunpack.c.h.b16 %v886
  %v1525 = vunpack.c.l.b16 %v887
  %v1526 = vunpack.c.h.b16 %v887
  %v1527 = vunpack.c.l.b16 %v888
  %v1528 = vunpack.c.l.b16 %v889
  %v1529 = vunpack.c.h.b16 %v889
  %v1530 = vunpack.c.l.b16 %v890
  %v1531 = vunpack.c.h.b16 %v890
  %v1532 = vunpack.c.l.b16 %v891
  %v1533 = vunpack.c.h.b16 %v891
  %v1534 = vunpack.c.l.b16 %v892
  %v1535 = vunpack.c.l.b16 %v893
  %v1536 = vunpack.c.h.b16 %v893
  %v1537 = vunpack.c.l.b16 %v894
  %v1538 = vunpack.c.h.b16 %v894
  %v1539 = vunpack.c.l.b16 %v895
  %v1540 = vunpack.c.h.b16 %v895
  %v1541 = vunpack.c.l.b16 %v896
  %v1542 = vunpack.c.l.b16 %v897
  %v1543 = vunpack.c.h.b16 %v897
  %v1544 = vunpack.c.l.b16 %v898
  %v1545 = vunpack.c.h.b16 %v898
  %v1546 = vunpack.c.l.b16 %v899
  %v1547 = vunpack.c.h.b16 %v899
  %v1548 = vunpack.c.l.b16 %v900
  %v1549 = vunpack.c.l.b16 %v901
  %v1550 = vunpack.c.h.b16 %v901
  %v1551 = vunpack.c.l.b16 %v902
  %v1552 = vunpack.c.h.b16 %v902
  %v1553 = vunpack.c.l.b16 %v903
  %v1554 = vunpack.c.h.b16 %v903
  %v1555 = vunpack.c.l.b16 %v904
  %v1556 = vunpack.c.l.b16 %v905
  %v1557 = vunpack.c.h.b16 %v905
  %v1558 = vunpack.c.l.b16 %v906
  %v1559 = vunpack.c.h.b16 %v906
  %v1560 = vunpack.c.l.b16 %v907
  %v1561 = vunpack.c.h.b16 %v907
  %v1562 = vunpack.c.l.b16 %v908
  %v1563 = vunpack.c.l.b16 %v909
  %v1564 = vunpack.c.h.b16 %v909
  %v1565 = vunpack.c.l.b16 %v910
  %v1566 = vunpack.c.h.b16 %v910
  %v1567 = vunpack.c.l.b16 %v911
  %v1568 = vunpack.c.h.b16 %v911
  %v1569 = vunpack.c.l.b16 %v912
  %v1570 = vunpack.c.l.b16 %v913
  %v1571 = vunpack.c.h.b16 %v913
  %v1572 = vunpack.c.l.b16 %v914
  %v1573 = vunpack.c.h.b16 %v914
  %v1574 = vunpack.c.l.b16 %v915
  %v1575 = vunpack.c.h.b16 %v915
  %v1576 = vunpack.c.l.b16 %v916
  %v1577 = vunpack.c.l.b16 %v917
  %v1578 = vunpack.c.h.b16 %v917
  %v1579 = vunpack.c.l.b16 %v918
  %v1580 = vunpack.c.h.b16 %v918
  %v1581 = vunpack.c.l.b16 %v919
  %v1582 = vunpack.c.h.b16 %v919
  %v1583 = vunpack.c.l.b16 %v920
  %v1584 = vunpack.c.l.b16 %v921
  %v1585 = vunpack.c.h.b16 %v921
  %v1586 = vunpack.c.l.b16 %v922
  %v1587 = vunpack.c.h.b16 %v922
  %v1588 = vunpack.c.l.b16 %v923
  %v1589 = vunpack.c.h.b16 %v923
  %v1590 = vunpack.c.l.b16 %v924
  %v1591 = vunpack.c.l.b16 %v925
  %v1592 = vunpack.c.h.b16 %v925
  %v1593 = vunpack.c.l.b16 %v926
  %v1594 = vunpack.c.h.b16 %v926
  %v1595 = vunpack.c.l.b16 %v927
  %v1596 = vunpack.c.h.b16 %v927
  %v1597 = vunpack.c.l.b16 %v928
  %v1598 = vunpack.c.l.b16 %v929
  %v1599 = vunpack.c.h.b16 %v929
  %v1600 = vunpack.c.l.b16 %v930
  %v1601 = vunpack.c.h.b16 %v930
  %v1602 = vunpack.c.l.b16 %v931
  %v1603 = vunpack.c.h.b16 %v931
  %v1604 = vunpack.c.l.b16 %v932
  %v1605 = vunpack.c.l.b16 %v933
  %v1606 = vunpack.c.h.b16 %v933
  %v1607 = vunpack.c.l.b16 %v934
  %v1608 = vunpack.c.h.b16 %v934
  %v1609 = vunpack.c.l.b16 %v935
  %v1610 = vunpack.c.h.b16 %v935
  %v1611 = vunpack.c.l.b16 %v936
  %v1612 = vunpack.c.l.b16 %v937
  %v1613 = vunpack.c.h.b16 %v937
  %v1614 = vunpack.c.l.b16 %v938
  %v1615 = vunpack.c.h.b16 %v938
  %v1616 = vunpack.c.l.b16 %v939
  %v1617 = vunpack.c.h.b16 %v939
  %v1618 = vunpack.c.l.b16 %v940
  %v1619 = vunpack.c.l.b16 %v941
  %v1620 = vunpack.c.h.b16 %v941
  %v1621 = vunpack.c.l.b16 %v942
  %v1622 = vunpack.c.h.b16 %v942
  %v1623 = vunpack.c.l.b16 %v943
  %v1624 = vunpack.c.h.b16 %v943
  %v1625 = vunpack.c.l.b16 %v944
  %v1626 = vunpack.c.l.b16 %v945
  %v1627 = vunpack.c.h.b16 %v945
  %v1628 = vunpack.c.l.b16 %v946
  %v1629 = vunpack.c.h.b16 %v946
  %v1630 = vunpack.c.l.b16 %v947
  %v1631 = vunpack.c.h.b16 %v947
  %v1632 = vunpack.c.l.b16 %v948
  %v1633 = vunpack.c.l.b16 %v949
  %v1634 = vunpack.c.h.b16 %v949
  %v1635 = vunpack.c.l.b16 %v950
  %v1636 = vunpack.c.h.b16 %v950
  %v1637 = vunpack.c.l.b16 %v951
  %v1638 = vunpack.c.h.b16 %v951
  %v1639 = vunpack.c.l.b16 %v952
  %v1640 = vunpack.c.l.b16 %v953
  %v1641 = vunpack.c.h.b16 %v953
  %v1642 = vunpack.c.l.b16 %v954
  %v1643 = vunpack.c.h.b16 %v954
  %v1644 = vunpack.c.l.b16 %v955
  %v1645 = vunpack.c.h.b16 %v955
  %v1646 = vunpack.c.l.b16 %v956
  %v1647 = vunpack.c.l.b16 %v957
  %v1648 = vunpack.c.h.b16 %v957
  %v1649 = vunpack.c.l.b16 %v958
  %v1650 = vunpack.c.h.b16 %v958
  %v1651 = vunpack.c.l.b16 %v959
  %v1652 = vunpack.c.h.b16 %v959
  %v1653 = vunpack.c.l.b16 %v960
  %v1654 = vunpack.c.l.b16 %v961
  %v1655 = vunpack.c.h.b16 %v961
  %v1656 = vunpack.c.l.b16 %v962
  %v1657 = vunpack.c.h.b16 %v962
  %v1658 = vunpack.c.l.b16 %v963
  %v1659 = vunpack.c.h.b16 %v963
  %v1660 = vunpack.c.l.b16 %v964
  %v1661 = vunpack.c.l.b16 %v965
  %v1662 = vunpack.c.h.b16 %v965
  %v1663 = vunpack.c.l.b16 %v966
  %v1664 = vunpack.c.h.b16 %v966
  %v1665 = vunpack.c.l.b16 %v967
  %v1666 = vunpack.c.h.b16 %v967
  %v1667 = vunpack.c.l.b16 %v968
  %v1668 = vunpack.c.l.b16 %v969
  %v1669 = vunpack.c.h.b16 %v969
  %v1670 = vunpack.c.l.b16 %v970
  %v1671 = vunpack.c.h.b16 %v970
  %v1672 = vunpack.c.l.b16 %v971
  %v1673 = vunpack.c.h.b16 %v971
  %v1674 = vunpack.c.l.b16 %v972
  %v1675 = vunpack.c.l.b16 %v973
  %v1676 = vunpack.c.h.b16 %v973
  %v1677 = vunpack.c.l.b16 %v974
  %v1678 = vunpack.c.h.b16 %v974
  %v1679 = vunpack.c.l.b16 %v975
  %v1680 = vunpack.c.h.b16 %v975
  %v1681 = vunpack.c.l.b16 %v976
  %v1682 = vunpack.c.l.b16 %v977
  %v1683 = vunpack.c.h.b16 %v977
  %v1684 = vunpack.c.l.b16 %v978
  %v1685 = vunpack.c.h.b16 %v978
  %v1686 = vunpack.c.l.b16 %v979
  %v1687 = vunpack.c.h.b16 %v979
  %v1688 = vunpack.c.l.b16 %v980
  %v1689 = vunpack.c.l.b16 %v981
  %v1690 = vunpack.c.h.b16 %v981
  %v1691 = vunpack.c.l.b16 %v982
  %v1692 = vunpack.c.h.b16 %v982
  %v1693 = vunpack.c.l.b16 %v983
  %v1694 = vunpack.c.h.b16 %v983
  %v1695 = vunpack.c.l.b16 %v984
  %v1696 = vunpack.c.l.b16 %v985
  %v1697 = vunpack.c.h.b16 %v985
  %v1698 = vunpack.c.l.b16 %v986
  %v1699 = vunpack.c.h.b16 %v986
  %v1700 = vunpack.c.l.b16 %v987
  %v1701 = vunpack.c.h.b16 %v987
  %v1702 = vunpack.c.l.b16 %v988
  %v1703 = vunpack.c.l.b16 %v989
  %v1704 = vunpack.c.h.b16 %v989
  %v1705 = vunpack.c.l.b16 %v990
  %v1706 = vunpack.c.h.b16 %v990
  %v1707 = vunpack.c.l.b16 %v991
  %v1708 = vunpack.c.h.b16 %v991
  %v1709 = vunpack.c.l.b16 %v992
  %v1710 = vunpack.c.l.b16 %v993
  %v1711 = vunpack.c.h.b16 %v993
  %v1712 = vunpack.c.l.b16 %v994
  %v1713 = vunpack.c.h.b16 %v994
  %v1714 = vunpack.c.l.b16 %v995
  %v1715 = vunpack.c.h.b16 %v995
  %v1716 = vunpack.c.l.b16 %v996
  %v1717 = vunpack.c.l.b16 %v997
  %v1718 = vunpack.c.h.b16 %v997
  %v1719 = vunpack.c.l.b16 %v998
  %v1720 = vunpack.c.h.b16 %v998
  %v1721 = vunpack.c.l.b16 %v999
  %v1722 = vunpack.c.h.b16 %v999
  %v1723 = vunpack.c.l.b16 %v1000
  %v1724 = vunpack.c.l.b16 %v1001
  %v1725 = vunpack.c.h.b16 %v1001
  %v1726 = vunpack.c.l.b16 %v1002
  %v1727 = vunpack.c.h.b16 %v1002
  %v1728 = vunpack.c.l.b16 %v1003
  %v1729 = vunpack.c.h.b16 %v1003
  %v1730 = vunpack.c.l.b16 %v1004
  %v1731 = vunpack.c.l.b16 %v1005
  %v1732 = vunpack.c.h.b16 %v1005
  %v1733 = vunpack.c.l.b16 %v1006
  %v1734 = vunpack.c.h.b16 %v1006
  %v1735 = vunpack.c.l.b16 %v1007
  %v1736 = vunpack.c.h.b16 %v1007
  %v1737 = vunpack.c.l.b16 %v1008
  %v1738 = vunpack.c.l.b16 %v1009
  %v1739 = vunpack.c.h.b16 %v1009
  %v1740 = vunpack.c.l.b16 %v1010
  %v1741 = vunpack.c.h.b16 %v1010
  %v1742 = vunpack.c.l.b16 %v1011
  %v1743 = vunpack.c.h.b16 %v1011
  %v1744 = vunpack.c.l.b16 %v1012
  %v1745 = vunpack.c.l.b16 %v1013
  %v1746 = vunpack.c.h.b16 %v1013
  %v1747 = vunpack.c.l.b16 %v1014
  %v1748 = vunpack.c.h.b16 %v1014
  %v1749 = vunpack.c.l.b16 %v1015
  %v1750 = vunpack.c.h.b16 %v1015
  %v1751 = vunpack.c.l.b16 %v1016
  %v1752 = vunpack.c.l.b16 %v1017
  %v1753 = vunpack.c.h.b16 %v1017
  %v1754 = vunpack.c.l.b16 %v1018
  %v1755 = vunpack.c.h.b16 %v1018
  %v1756 = vunpack.c.l.b16 %v1019
  %v1757 = vunpack.c.h.b16 %v1019
  %v1758 = vunpack.c.l.b16 %v1020
  %v1759 = vunpack.c.l.b16 %v1021
  %v1760 = vunpack.c.h.b16 %v1021
  %v1761 = vunpack.c.l.b16 %v1022
  %v1762 = vunpack.c.h.b16 %v1022
  %v1763 = vunpack.c.l.b16 %v1023
  %v1764 = vunpack.c.h.b16 %v1023
  %v1765 = vunpack.c.l.b16 %v1024
  %v1766 = vpack.c.b16 %v1325, %v1318
  %v1767 = vpack.c.b16 %v1326, %v1319
  %v1768 = vpack.c.b16 %v1327, %v1320
  %v1769 = vpack.c.b16 %v1328, %v1321
  %v1770 = vpack.c.b16 %v1329, %v1322
  %v1771 = vpack.c.b16 %v1330, %v1323
  %v1772 = vpack.c.b16 %v1331, %v1324
  %v1773 = vpack.c.b16 %v1339, %v1332
  %v1774 = vpack.c.b16 %v1340, %v1333
  %v1775 = vpack.c.b16 %v1341, %v1334
  %v1776 = vpack.c.b16 %v1342, %v1335
  %v1777 = vpack.c.b16 %v1343, %v1336
  %v1778 = vpack.c.b16 %v1344, %v1337
  %v1779 = vpack.c.b16 %v1345, %v1338
  %v1780 = vpack.c.b16 %v1353, %v1346
  %v1781 = vpack.c.b16 %v1354, %v1347
  %v1782 = vpack.c.b16 %v1355, %v1348
  %v1783 = vpack.c.b16 %v1356, %v1349
  %v1784 = vpack.c.b16 %v1357, %v1350
  %v1785 = vpack.c.b16 %v1358, %v1351
  %v1786 = vpack.c.b16 %v1359, %v1352
  %v1787 = vpack.c.b16 %v1367, %v1360
  %v1788 = vpack.c.b16 %v1368, %v1361
  %v1789 = vpack.c.b16 %v1369, %v1362
  %v1790 = vpack.c.b16 %v1370, %v1363
  %v1791 = vpack.c.b16 %v1371, %v1364
  %v1792 = vpack.c.b16 %v1372, %v1365
  %v1793 = vpack.c.b16 %v1373, %v1366
  %v1794 = vpack.c.b16 %v1381, %v1374
  %v1795 = vpack.c.b16 %v1382, %v1375
  %v1796 = vpack.c.b16 %v1383, %v1376
  %v1797 = vpack.c.b16 %v1384, %v1377
  %v1798 = vpack.c.b16 %v1385, %v1378
  %v1799 = vpack.c.b16 %v1386, %v1379
  %v1800 = vpack.c.b16 %v1387, %v1380
  %v1801 = vpack.c.b16 %v1395, %v1388
  %v1802 = vpack.c.b16 %v1396, %v1389
  %v1803 = vpack.c.b16 %v1397, %v1390
  %v1804 = vpack.c.b16 %v1398, %v1391
  %v1805 = vpack.c.b16 %v1399, %v1392
  %v1806 = vpack.c.b16 %v1400, %v1393
  %v1807 = vpack.c.b16 %v1401, %v1394
  %v1808 = vpack.c.b16 %v1409, %v1402
  %v1809 = vpack.c.b16 %v1410, %v1403
  %v1810 = vpack.c.b16 %v1411, %v1404
  %v1811 = vpack.c.b16 %v1412, %v1405
  %v1812 = vpack.c.b16 %v1413, %v1406
  %v1813 = vpack.c.b16 %v1414, %v1407
  %v1814 = vpack.c.b16 %v1415, %v1408
  %v1815 = vpack.c.b16 %v1423, %v1416
  %v1816 = vpack.c.b16 %v1424, %v1417
  %v1817 = vpack.c.b16 %v1425, %v1418
  %v1818 = vpack.c.b16 %v1426, %v1419
  %v1819 = vpack.c.b16 %v1427, %v1420
  %v1820 = vpack.c.b16 %v1428, %v1421
  %v1821 = vpack.c.b16 %v1429, %v1422
  %v1822 = vpack.c.b16 %v1437, %v1430
  %v1823 = vpack.c.b16 %v1438, %v1431
  %v1824 = vpack.c.b16 %v1439, %v1432
  %v1825 = vpack.c.b16 %v1440, %v1433
  %v1826 = vpack.c.b16 %v1441, %v1434
  %v1827 = vpack.c.b16 %v1442, %v1435
  %v1828 = vpack.c.b16 %v1443, %v1436
  %v1829 = vpack.c.b16 %v1451, %v1444
  %v1830 = vpack.c.b16 %v1452, %v1445
  %v1831 = vpack.c.b16 %v1453, %v1446
  %v1832 = vpack.c.b16 %v1454, %v1447
  %v1833 = vpack.c.b16 %v1455, %v1448
  %v1834 = vpack.c.b16 %v1456, %v1449
  %v1835 = vpack.c.b16 %v1457, %v1450
  %v1836 = vpack.c.b16 %v1465, %v1458
  %v1837 = vpack.c.b16 %v1466, %v1459
  %v1838 = vpack.c.b16 %v1467, %v1460
  %v1839 = vpack.c.b16 %v1468, %v1461
  %v1840 = vpack.c.b16 %v1469, %v1462
  %v1841 = vpack.c.b16 %v1470, %v1463
  %v1842 = vpack.c.b16 %v1471, %v1464
  %v1843 = vpack.c.b16 %v1479, %v1472
  %v1844 = vpack.c.b16 %v1480, %v1473
  %v1845 = vpack.c.b16 %v1481, %v1474
  %v1846 = vpack.c.b16 %v1482, %v1475
  %v1847 = vpack.c.b16 %v1483, %v1476
  %v1848 = vpack.c.b16 %v1484, %v1477
  %v1849 = vpack.c.b16 %v1485, %v1478
  %v1850 = vpack.c.b16 %v1493, %v1486
  %v1851 = vpack.c.b16 %v1494, %v1487
  %v1852 = vpack.c.b16 %v1495, %v1488
  %v1853 = vpack.c.b16 %v1496, %v1489
  %v1854 = vpack.c.b16 %v1497, %v1490
  %v1855 = vpack.c.b16 %v1498, %v1491
  %v1856 = vpack.c.b16 %v1499, %v1492
  %v1857 = vpack.c.b16 %v1507, %v1500
  %v1858 = vpack.c.b16 %v1508, %v1501
  %v1859 = vpack.c.b16 %v1509, %v1502
  %v1860 = vpack.c.b16 %v1510, %v1503
  %v1861 = vpack.c.b16 %v1511, %v1504
  %v1862 = vpack.c.b16 %v1512, %v1505
  %v1863 = vpack.c.b16 %v1513, %v1506
  %v1864 = vpack.c.b16 %v1521, %v1514
  %v1865 = vpack.c.b16 %v1522, %v1515
  %v1866 = vpack.c.b16 %v1523, %v1516
  %v1867 = vpack.c.b16 %v1524, %v1517
  %v1868 = vpack.c.b16 %v1525, %v1518
  %v1869 = vpack.c.b16 %v1526, %v1519
  %v1870 = vpack.c.b16 %v1527, %v1520
  %v1871 = vpack.c.b16 %v1535, %v1528
  %v1872 = vpack.c.b16 %v1536, %v1529
  %v1873 = vpack.c.b16 %v1537, %v1530
  %v1874 = vpack.c.b16 %v1538, %v1531
  %v1875 = vpack.c.b16 %v1539, %v1532
  %v1876 = vpack.c.b16 %v1540, %v1533
  %v1877 = vpack.c.b16 %v1541, %v1534
  %v1878 = vpack.c.b16 %v1549, %v1542
  %v1879 = vpack.c.b16 %v1550, %v1543
  %v1880 = vpack.c.b16 %v1551, %v1544
  %v1881 = vpack.c.b16 %v1552, %v1545
  %v1882 = vpack.c.b16 %v1553, %v1546
  %v1883 = vpack.c.b16 %v1554, %v1547
  %v1884 = vpack.c.b16 %v1555, %v1548
  %v1885 = vpack.c.b16 %v1563, %v1556
  %v1886 = vpack.c.b16 %v1564, %v1557
  %v1887 = vpack.c.b16 %v1565, %v1558
  %v1888 = vpack.c.b16 %v1566, %v1559
  %v1889 = vpack.c.b16 %v1567, %v1560
  %v1890 = vpack.c.b16 %v1568, %v1561
  %v1891 = vpack.c.b16 %v1569, %v1562
  %v1892 = vpack.c.b16 %v1577, %v1570
  %v1893 = vpack.c.b16 %v1578, %v1571
  %v1894 = vpack.c.b16 %v1579, %v1572
  %v1895 = vpack.c.b16 %v1580, %v1573
  %v1896 = vpack.c.b16 %v1581, %v1574
  %v1897 = vpack.c.b16 %v1582, %v1575
  %v1898 = vpack.c.b16 %v1583, %v1576
  %v1899 = vpack.c.b16 %v1591, %v1584
  %v1900 = vpack.c.b16 %v1592, %v1585
  %v1901 = vpack.c.b16 %v1593, %v1586
  %v1902 = vpack.c.b16 %v1594, %v1587
  %v1903 = vpack.c.b16 %v1595, %v1588
  %v1904 = vpack.c.b16 %v1596, %v1589
  %v1905 = vpack.c.b16 %v1597, %v1590
  %v1906 = vpack.c.b16 %v1605, %v1598
  %v1907 = vpack.c.b16 %v1606, %v1599
  %v1908 = vpack.c.b16 %v1607, %v1600
  %v1909 = vpack.c.b16 %v1608, %v1601
  %v1910 = vpack.c.b16 %v1609, %v1602
  %v1911 = vpack.c.b16 %v1610, %v1603
  %v1912 = vpack.c.b16 %v1611, %v1604
  %v1913 = vpack.c.b16 %v1619, %v1612
  %v1914 = vpack.c.b16 %v1620, %v1613
  %v1915 = vpack.c.b16 %v1621, %v1614
  %v1916 = vpack.c.b16 %v1622, %v1615
  %v1917 = vpack.c.b16 %v1623, %v1616
  %v1918 = vpack.c.b16 %v1624, %v1617
  %v1919 = vpack.c.b16 %v1625, %v1618
  %v1920 = vpack.c.b16 %v1633, %v1626
  %v1921 = vpack.c.b16 %v1634, %v1627
  %v1922 = vpack.c.b16 %v1635, %v1628
  %v1923 = vpack.c.b16 %v1636, %v1629
  %v1924 = vpack.c.b16 %v1637, %v1630
  %v1925 = vpack.c.b16 %v1638, %v1631
  %v1926 = vpack.c.b16 %v1639, %v1632
  %v1927 = vpack.c.b16 %v1647, %v1640
  %v1928 = vpack.c.b16 %v1648, %v1641
  %v1929 = vpack.c.b16 %v1649, %v1642
  %v1930 = vpack.c.b16 %v1650, %v1643
  %v1931 = vpack.c.b16 %v1651, %v1644
  %v1932 = vpack.c.b16 %v1652, %v1645
  %v1933 = vpack.c.b16 %v1653, %v1646
  %v1934 = vpack.c.b16 %v1661, %v1654
  %v1935 = vpack.c.b16 %v1662, %v1655
  %v1936 = vpack.c.b16 %v1663, %v1656
  %v1937 = vpack.c.b16 %v1664, %v1657
  %v1938 = vpack.c.b16 %v1665, %v1658
  %v1939 = vpack.c.b16 %v1666, %v1659
  %v1940 = vpack.c.b16 %v1667, %v1660
  %v1941 = vpack.c.b16 %v1675, %v1668
  %v1942 = vpack.c.b16 %v1676, %v1669
  %v1943 = vpack.c.b16 %v1677, %v1670
  %v1944 = vpack.c.b16 %v1678, %v1671
  %v1945 = vpack.c.b16 %v1679, %v1672
  %v1946 = vpack.c.b16 %v1680, %v1673
  %v1947 = vpack.c.b16 %v1681, %v1674
  %v1948 = vpack.c.b16 %v1689, %v1682
  %v1949 = vpack.c.b16 %v1690, %v1683
  %v1950 = vpack.c.b16 %v1691, %v1684
  %v1951 = vpack.c.b16 %v1692, %v1685
  %v1952 = vpack.c.b16 %v1693, %v1686
  %v1953 = vpack.c.b16 %v1694, %v1687
  %v1954 = vpack.c.b16 %v1695, %v1688
  %v1955 = vpack.c.b16 %v1703, %v1696
  %v1956 = vpack.c.b16 %v1704, %v1697
  %v1957 = vpack.c.b16 %v1705, %v1698
  %v1958 = vpack.c.b16 %v1706, %v1699
  %v1959 = vpack.c.b16 %v1707, %v1700
  %v1960 = vpack.c.b16 %v1708, %v1701
  %v1961 = vpack.c.b16 %v1709, %v1702
  %v1962 = vpack.c.b16 %v1717, %v1710
  %v1963 = vpack.c.b16 %v1718, %v1711
  %v1964 = vpack.c.b16 %v1719, %v1712
  %v1965 = vpack.c.b16 %v1720, %v1713
  %v1966 = vpack.c.b16 %v1721, %v1714
  %v1967 = vpack.c.b16 %v1722, %v1715
  %v1968 = vpack.c.b16 %v1723, %v1716
  %v1969 = vpack.c.b16 %v1731, %v1724
  %v1970 = vpack.c.b16 %v1732, %v1725
  %v1971 = vpack.c.b16 %v1733, %v1726
  %v1972 = vpack.c.b16 %v1734, %v1727
  %v1973 = vpack.c.b16 %v1735, %v1728
  %v1974 = vpack.c.b16 %v1736, %v1729
  %v1975 = vpack.c.b16 %v1737, %v1730
  %v1976 = vpack.c.b16 %v1745, %v1738
  %v1977 = vpack.c.b16 %v1746, %v1739
  %v1978 = vpack.c.b16 %v1747, %v1740
  %v1979 = vpack.c.b16 %v1748, %v1741
  %v1980 = vpack.c.b16 %v1749, %v1742
  %v1981 = vpack.c.b16 %v1750, %v1743
  %v1982 = vpack.c.b16 %v1751, %v1744
  %v1983 = vpack.c.b16 %v1759, %v1752
  %v1984 = vpack.c.b16 %v1760, %v1753
  %v1985 = vpack.c.b16 %v1761, %v1754
  %v1986 = vpack.c.b16 %v1762, %v1755
  %v1987 = vpack.c.b16 %v1763, %v1756
  %v1988 = vpack.c.b16 %v1764, %v1757
  %v1989 = vpack.c.b16 %v1765, %v1758
  %2214 = vmatprep.subr.bf16.mxu0 %v1767
  %2215 = vmatpush1.bf16.msra.mxu0 %v1766
  %2216 = vmatprep.subr.bf16.mxu0 %v1774
  %2217 = vmatpush1.bf16.msra.mxu0 %v1773
  %2218 = vmatprep.subr.bf16.mxu0 %v1781
  %2219 = vmatpush1.bf16.msra.mxu0 %v1780
  %2220 = vmatprep.subr.bf16.mxu0 %v1788
  %2221 = vmatpush1.bf16.msra.mxu0 %v1787
  %2222 = vmatprep.subr.bf16.mxu0 %v1795
  %2223 = vmatpush1.bf16.msra.mxu0 %v1794
  %2224 = vmatprep.subr.bf16.mxu0 %v1802
  %2225 = vmatpush1.bf16.msra.mxu0 %v1801
  %2226 = vmatprep.subr.bf16.mxu0 %v1809
  %2227 = vmatpush1.bf16.msra.mxu0 %v1808
  %2228 = vmatprep.subr.bf16.mxu0 %v1816
  %2229 = vmatpush1.bf16.msra.mxu0 %v1815
  %2230 = vmatprep.subr.bf16.mxu0 %v1823
  %2231 = vmatpush1.bf16.msra.mxu0 %v1822
  %2232 = vmatprep.subr.bf16.mxu0 %v1830
  %2233 = vmatpush1.bf16.msra.mxu0 %v1829
  %2234 = vmatprep.subr.bf16.mxu0 %v1837
  %2235 = vmatpush1.bf16.msra.mxu0 %v1836
  %2236 = vmatprep.subr.bf16.mxu0 %v1844
  %2237 = vmatpush1.bf16.msra.mxu0 %v1843
  %2238 = vmatprep.subr.bf16.mxu0 %v1851
  %2239 = vmatpush1.bf16.msra.mxu0 %v1850
  %2240 = vmatprep.subr.bf16.mxu0 %v1858
  %2241 = vmatpush1.bf16.msra.mxu0 %v1857
  %2242 = vmatprep.subr.bf16.mxu0 %v1865
  %2243 = vmatpush1.bf16.msra.mxu0 %v1864
  %2244 = vmatprep.subr.bf16.mxu0 %v1872
  %2245 = vmatpush1.bf16.msra.mxu0 %v1871
  %2246 = vmatprep.mubr.bf16.mxu0 %v766
  %2247 = vmatmul.mubr.bf16.gmra.mrb[0].mxu0 %v765
  %v2248 = vpop.f32.mrb[0].mxu0
  %v2249 = vadd.f32 %v1030, %v2248
  %v2250 = vpop.f32.mrb[0].mxu0
  %v2251 = vadd.f32 %v1034, %v2250
  %v2252 = vpop.f32.mrb[0].mxu0
  %v2253 = vpop.f32.mrb[0].mxu0
  %2254 = vdwg.mxu0
  %2255 = vmatprep.subr.bf16.mxu0 %v1879
  %2256 = vmatpush1.bf16.msra.mxu0 %v1878
  %2257 = vmatprep.subr.bf16.mxu0 %v1886
  %2258 = vmatpush1.bf16.msra.mxu0 %v1885
  %2259 = vmatprep.subr.bf16.mxu0 %v1893
  %2260 = vmatpush1.bf16.msra.mxu0 %v1892
  %2261 = vmatprep.subr.bf16.mxu0 %v1900
  %2262 = vmatpush1.bf16.msra.mxu0 %v1899
  %2263 = vmatprep.subr.bf16.mxu0 %v1907
  %2264 = vmatpush1.bf16.msra.mxu0 %v1906
  %2265 = vmatprep.subr.bf16.mxu0 %v1914
  %2266 = vmatpush1.bf16.msra.mxu0 %v1913
  %2267 = vmatprep.subr.bf16.mxu0 %v1921
  %2268 = vmatpush1.bf16.msra.mxu0 %v1920
  %2269 = vmatprep.subr.bf16.mxu0 %v1928
  %2270 = vmatpush1.bf16.msra.mxu0 %v1927
  %2271 = vmatprep.subr.bf16.mxu0 %v1935
  %2272 = vmatpush1.bf16.msra.mxu0 %v1934
  %2273 = vmatprep.subr.bf16.mxu0 %v1942
  %2274 = vmatpush1.bf16.msra.mxu0 %v1941
  %2275 = vmatprep.subr.bf16.mxu0 %v1949
  %2276 = vmatpush1.bf16.msra.mxu0 %v1948
  %2277 = vmatprep.subr.bf16.mxu0 %v1956
  %2278 = vmatpush1.bf16.msra.mxu0 %v1955
  %2279 = vmatprep.subr.bf16.mxu0 %v1963
  %2280 = vmatpush1.bf16.msra.mxu0 %v1962
  %2281 = vmatprep.subr.bf16.mxu0 %v1970
  %2282 = vmatpush1.bf16.msra.mxu0 %v1969
  %2283 = vmatprep.subr.bf16.mxu0 %v1977
  %2284 = vmatpush1.bf16.msra.mxu0 %v1976
  %2285 = vmatprep.subr.bf16.mxu0 %v1984
  %2286 = vmatpush1.bf16.msra.mxu0 %v1983
  %2287 = vmatprep.mubr.bf16.mxu0 %v768
  %2288 = vmatmul.mubr.bf16.gmra.mrb[0].mxu0 %v767
  %v2289 = vpop.f32.mrb[0].mxu0
  %v2290 = vadd.f32 %v2249, %v2289
  %v2291 = vpop.f32.mrb[0].mxu0
  %v2292 = vadd.f32 %v2251, %v2291
  %v2293 = vpop.f32.mrb[0].mxu0
  %v2294 = vpop.f32.mrb[0].mxu0
  %2295 = vdwg.mxu0
  %2296 = vmatprep.subr.bf16.mxu0 %v1769
  %2297 = vmatpush1.bf16.msra.mxu0 %v1768
  %2298 = vmatprep.subr.bf16.mxu0 %v1776
  %2299 = vmatpush1.bf16.msra.mxu0 %v1775
  %2300 = vmatprep.subr.bf16.mxu0 %v1783
  %2301 = vmatpush1.bf16.msra.mxu0 %v1782
  %2302 = vmatprep.subr.bf16.mxu0 %v1790
  %2303 = vmatpush1.bf16.msra.mxu0 %v1789
  %2304 = vmatprep.subr.bf16.mxu0 %v1797
  %2305 = vmatpush1.bf16.msra.mxu0 %v1796
  %2306 = vmatprep.subr.bf16.mxu0 %v1804
  %2307 = vmatpush1.bf16.msra.mxu0 %v1803
  %2308 = vmatprep.subr.bf16.mxu0 %v1811
  %2309 = vmatpush1.bf16.msra.mxu0 %v1810
  %2310 = vmatprep.subr.bf16.mxu0 %v1818
  %2311 = vmatpush1.bf16.msra.mxu0 %v1817
  %2312 = vmatprep.subr.bf16.mxu0 %v1825
  %2313 = vmatpush1.bf16.msra.mxu0 %v1824
  %2314 = vmatprep.subr.bf16.mxu0 %v1832
  %2315 = vmatpush1.bf16.msra.mxu0 %v1831
  %2316 = vmatprep.subr.bf16.mxu0 %v1839
  %2317 = vmatpush1.bf16.msra.mxu0 %v1838
  %2318 = vmatprep.subr.bf16.mxu0 %v1846
  %2319 = vmatpush1.bf16.msra.mxu0 %v1845
  %2320 = vmatprep.subr.bf16.mxu0 %v1853
  %2321 = vmatpush1.bf16.msra.mxu0 %v1852
  %2322 = vmatprep.subr.bf16.mxu0 %v1860
  %2323 = vmatpush1.bf16.msra.mxu0 %v1859
  %2324 = vmatprep.subr.bf16.mxu0 %v1867
  %2325 = vmatpush1.bf16.msra.mxu0 %v1866
  %2326 = vmatprep.subr.bf16.mxu0 %v1874
  %2327 = vmatpush1.bf16.msra.mxu0 %v1873
  %2328 = vmatprep.mubr.bf16.mxu0 %v766
  %2329 = vmatmul.mubr.bf16.gmra.mrb[0].mxu0 %v765
  %v2330 = vpop.f32.mrb[0].mxu0
  %v2331 = vadd.f32 %v1038, %v2330
  %v2332 = vpop.f32.mrb[0].mxu0
  %v2333 = vadd.f32 %v1042, %v2332
  %v2334 = vpop.f32.mrb[0].mxu0
  %v2335 = vpop.f32.mrb[0].mxu0
  %2336 = vdwg.mxu0
  %2337 = vmatprep.subr.bf16.mxu0 %v1881
  %2338 = vmatpush1.bf16.msra.mxu0 %v1880
  %2339 = vmatprep.subr.bf16.mxu0 %v1888
  %2340 = vmatpush1.bf16.msra.mxu0 %v1887
  %2341 = vmatprep.subr.bf16.mxu0 %v1895
  %2342 = vmatpush1.bf16.msra.mxu0 %v1894
  %2343 = vmatprep.subr.bf16.mxu0 %v1902
  %2344 = vmatpush1.bf16.msra.mxu0 %v1901
  %2345 = vmatprep.subr.bf16.mxu0 %v1909
  %2346 = vmatpush1.bf16.msra.mxu0 %v1908
  %2347 = vmatprep.subr.bf16.mxu0 %v1916
  %2348 = vmatpush1.bf16.msra.mxu0 %v1915
  %2349 = vmatprep.subr.bf16.mxu0 %v1923
  %2350 = vmatpush1.bf16.msra.mxu0 %v1922
  %2351 = vmatprep.subr.bf16.mxu0 %v1930
  %2352 = vmatpush1.bf16.msra.mxu0 %v1929
  %2353 = vmatprep.subr.bf16.mxu0 %v1937
  %2354 = vmatpush1.bf16.msra.mxu0 %v1936
  %2355 = vmatprep.subr.bf16.mxu0 %v1944
  %2356 = vmatpush1.bf16.msra.mxu0 %v1943
  %2357 = vmatprep.subr.bf16.mxu0 %v1951
  %2358 = vmatpush1.bf16.msra.mxu0 %v1950
  %2359 = vmatprep.subr.bf16.mxu0 %v1958
  %2360 = vmatpush1.bf16.msra.mxu0 %v1957
  %2361 = vmatprep.subr.bf16.mxu0 %v1965
  %2362 = vmatpush1.bf16.msra.mxu0 %v1964
  %2363 = vmatprep.subr.bf16.mxu0 %v1972
  %2364 = vmatpush1.bf16.msra.mxu0 %v1971
  %2365 = vmatprep.subr.bf16.mxu0 %v1979
  %2366 = vmatpush1.bf16.msra.mxu0 %v1978
  %2367 = vmatprep.subr.bf16.mxu0 %v1986
  %2368 = vmatpush1.bf16.msra.mxu0 %v1985
  %2369 = vmatprep.mubr.bf16.mxu0 %v768
  %2370 = vmatmul.mubr.bf16.gmra.mrb[0].mxu0 %v767
  %v2371 = vpop.f32.mrb[0].mxu0
  %v2372 = vadd.f32 %v2331, %v2371
  %v2373 = vpop.f32.mrb[0].mxu0
  %v2374 = vadd.f32 %v2333, %v2373
  %v2375 = vpop.f32.mrb[0].mxu0
  %v2376 = vpop.f32.mrb[0].mxu0
  %2377 = vdwg.mxu0
  %2378 = vmatprep.subr.bf16.mxu0 %v1771
  %2379 = vmatpush1.bf16.msra.mxu0 %v1770
  %2380 = vmatprep.subr.bf16.mxu0 %v1778
  %2381 = vmatpush1.bf16.msra.mxu0 %v1777
  %2382 = vmatprep.subr.bf16.mxu0 %v1785
  %2383 = vmatpush1.bf16.msra.mxu0 %v1784
  %2384 = vmatprep.subr.bf16.mxu0 %v1792
  %2385 = vmatpush1.bf16.msra.mxu0 %v1791
  %2386 = vmatprep.subr.bf16.mxu0 %v1799
  %2387 = vmatpush1.bf16.msra.mxu0 %v1798
  %2388 = vmatprep.subr.bf16.mxu0 %v1806
  %2389 = vmatpush1.bf16.msra.mxu0 %v1805
  %2390 = vmatprep.subr.bf16.mxu0 %v1813
  %2391 = vmatpush1.bf16.msra.mxu0 %v1812
  %2392 = vmatprep.subr.bf16.mxu0 %v1820
  %2393 = vmatpush1.bf16.msra.mxu0 %v1819
  %2394 = vmatprep.subr.bf16.mxu0 %v1827
  %2395 = vmatpush1.bf16.msra.mxu0 %v1826
  %2396 = vmatprep.subr.bf16.mxu0 %v1834
  %2397 = vmatpush1.bf16.msra.mxu0 %v1833
  %2398 = vmatprep.subr.bf16.mxu0 %v1841
  %2399 = vmatpush1.bf16.msra.mxu0 %v1840
  %2400 = vmatprep.subr.bf16.mxu0 %v1848
  %2401 = vmatpush1.bf16.msra.mxu0 %v1847
  %2402 = vmatprep.subr.bf16.mxu0 %v1855
  %2403 = vmatpush1.bf16.msra.mxu0 %v1854
  %2404 = vmatprep.subr.bf16.mxu0 %v1862
  %2405 = vmatpush1.bf16.msra.mxu0 %v1861
  %2406 = vmatprep.subr.bf16.mxu0 %v1869
  %2407 = vmatpush1.bf16.msra.mxu0 %v1868
  %2408 = vmatprep.subr.bf16.mxu0 %v1876
  %2409 = vmatpush1.bf16.msra.mxu0 %v1875
  %2410 = vmatprep.mubr.bf16.mxu0 %v766
  %2411 = vmatmul.mubr.bf16.gmra.mrb[0].mxu0 %v765
  %v2412 = vpop.f32.mrb[0].mxu0
  %v2413 = vadd.f32 %v1046, %v2412
  %v2414 = vpop.f32.mrb[0].mxu0
  %v2415 = vadd.f32 %v1050, %v2414
  %v2416 = vpop.f32.mrb[0].mxu0
  %v2417 = vpop.f32.mrb[0].mxu0
  %2418 = vdwg.mxu0
  %2419 = vmatprep.subr.bf16.mxu0 %v1883
  %2420 = vmatpush1.bf16.msra.mxu0 %v1882
  %2421 = vmatprep.subr.bf16.mxu0 %v1890
  %2422 = vmatpush1.bf16.msra.mxu0 %v1889
  %2423 = vmatprep.subr.bf16.mxu0 %v1897
  %2424 = vmatpush1.bf16.msra.mxu0 %v1896
  %2425 = vmatprep.subr.bf16.mxu0 %v1904
  %2426 = vmatpush1.bf16.msra.mxu0 %v1903
  %2427 = vmatprep.subr.bf16.mxu0 %v1911
  %2428 = vmatpush1.bf16.msra.mxu0 %v1910
  %2429 = vmatprep.subr.bf16.mxu0 %v1918
  %2430 = vmatpush1.bf16.msra.mxu0 %v1917
  %2431 = vmatprep.subr.bf16.mxu0 %v1925
  %2432 = vmatpush1.bf16.msra.mxu0 %v1924
  %2433 = vmatprep.subr.bf16.mxu0 %v1932
  %2434 = vmatpush1.bf16.msra.mxu0 %v1931
  %2435 = vmatprep.subr.bf16.mxu0 %v1939
  %2436 = vmatpush1.bf16.msra.mxu0 %v1938
  %2437 = vmatprep.subr.bf16.mxu0 %v1946
  %2438 = vmatpush1.bf16.msra.mxu0 %v1945
  %2439 = vmatprep.subr.bf16.mxu0 %v1953
  %2440 = vmatpush1.bf16.msra.mxu0 %v1952
  %2441 = vmatprep.subr.bf16.mxu0 %v1960
  %2442 = vmatpush1.bf16.msra.mxu0 %v1959
  %2443 = vmatprep.subr.bf16.mxu0 %v1967
  %2444 = vmatpush1.bf16.msra.mxu0 %v1966
  %2445 = vmatprep.subr.bf16.mxu0 %v1974
  %2446 = vmatpush1.bf16.msra.mxu0 %v1973
  %2447 = vmatprep.subr.bf16.mxu0 %v1981
  %2448 = vmatpush1.bf16.msra.mxu0 %v1980
  %2449 = vmatprep.subr.bf16.mxu0 %v1988
  %2450 = vmatpush1.bf16.msra.mxu0 %v1987
  %2451 = vmatprep.mubr.bf16.mxu0 %v768
  %2452 = vmatmul.mubr.bf16.gmra.mrb[0].mxu0 %v767
  %v2453 = vpop.f32.mrb[0].mxu0
  %v2454 = vadd.f32 %v2413, %v2453
  %v2455 = vpop.f32.mrb[0].mxu0
  %v2456 = vadd.f32 %v2415, %v2455
  %v2457 = vpop.f32.mrb[0].mxu0
  %v2458 = vpop.f32.mrb[0].mxu0
  %2459 = vdwg.mxu0
  %2460 = vmatprep.subr.bf16.mxu0 0
  %2461 = vmatpush1.bf16.msra.mxu0 %v1772
  %2462 = vmatprep.subr.bf16.mxu0 0
  %2463 = vmatpush1.bf16.msra.mxu0 %v1779
  %2464 = vmatprep.subr.bf16.mxu0 0
  %2465 = vmatpush1.bf16.msra.mxu0 %v1786
  %2466 = vmatprep.subr.bf16.mxu0 0
  %2467 = vmatpush1.bf16.msra.mxu0 %v1793
  %2468 = vmatprep.subr.bf16.mxu0 0
  %2469 = vmatpush1.bf16.msra.mxu0 %v1800
  %2470 = vmatprep.subr.bf16.mxu0 0
  %2471 = vmatpush1.bf16.msra.mxu0 %v1807
  %2472 = vmatprep.subr.bf16.mxu0 0
  %2473 = vmatpush1.bf16.msra.mxu0 %v1814
  %2474 = vmatprep.subr.bf16.mxu0 0
  %2475 = vmatpush1.bf16.msra.mxu0 %v1821
  %2476 = vmatprep.subr.bf16.mxu0 0
  %2477 = vmatpush1.bf16.msra.mxu0 %v1828
  %2478 = vmatprep.subr.bf16.mxu0 0
  %2479 = vmatpush1.bf16.msra.mxu0 %v1835
  %2480 = vmatprep.subr.bf16.mxu0 0
  %2481 = vmatpush1.bf16.msra.mxu0 %v1842
  %2482 = vmatprep.subr.bf16.mxu0 0
  %2483 = vmatpush1.bf16.msra.mxu0 %v1849
  %2484 = vmatprep.subr.bf16.mxu0 0
  %2485 = vmatpush1.bf16.msra.mxu0 %v1856
  %2486 = vmatprep.subr.bf16.mxu0 0
  %2487 = vmatpush1.bf16.msra.mxu0 %v1863
  %2488 = vmatprep.subr.bf16.mxu0 0
  %2489 = vmatpush1.bf16.msra.mxu0 %v1870
  %2490 = vmatprep.subr.bf16.mxu0 0
  %2491 = vmatpush1.bf16.msra.mxu0 %v1877
  %2492 = vmatprep.mubr.bf16.mxu0 %v766
  %2493 = vmatmul.mubr.bf16.gmra.mrb[0].mxu0 %v765
  %v2494 = vpop.f32.mrb[0].mxu0
  %v2495 = vadd.f32 %v1054, %v2494
  %v2496 = vpop.f32.mrb[0].mxu0
  %v2497 = vpop.f32.mrb[0].mxu0
  %v2498 = vpop.f32.mrb[0].mxu0
  %2499 = vdwg.mxu0
  %2500 = vmatprep.subr.bf16.mxu0 0
  %2501 = vmatpush1.bf16.msra.mxu0 %v1884
  %2502 = vmatprep.subr.bf16.mxu0 0
  %2503 = vmatpush1.bf16.msra.mxu0 %v1891
  %2504 = vmatprep.subr.bf16.mxu0 0
  %2505 = vmatpush1.bf16.msra.mxu0 %v1898
  %2506 = vmatprep.subr.bf16.mxu0 0
  %2507 = vmatpush1.bf16.msra.mxu0 %v1905
  %2508 = vmatprep.subr.bf16.mxu0 0
  %2509 = vmatpush1.bf16.msra.mxu0 %v1912
  %2510 = vmatprep.subr.bf16.mxu0 0
  %2511 = vmatpush1.bf16.msra.mxu0 %v1919
  %2512 = vmatprep.subr.bf16.mxu0 0
  %2513 = vmatpush1.bf16.msra.mxu0 %v1926
  %2514 = vmatprep.subr.bf16.mxu0 0
  %2515 = vmatpush1.bf16.msra.mxu0 %v1933
  %2516 = vmatprep.subr.bf16.mxu0 0
  %2517 = vmatpush1.bf16.msra.mxu0 %v1940
  %2518 = vmatprep.subr.bf16.mxu0 0
  %2519 = vmatpush1.bf16.msra.mxu0 %v1947
  %2520 = vmatprep.subr.bf16.mxu0 0
  %2521 = vmatpush1.bf16.msra.mxu0 %v1954
  %2522 = vmatprep.subr.bf16.mxu0 0
  %2523 = vmatpush1.bf16.msra.mxu0 %v1961
  %2524 = vmatprep.subr.bf16.mxu0 0
  %2525 = vmatpush1.bf16.msra.mxu0 %v1968
  %2526 = vmatprep.subr.bf16.mxu0 0
  %2527 = vmatpush1.bf16.msra.mxu0 %v1975
  %2528 = vmatprep.subr.bf16.mxu0 0
  %2529 = vmatpush1.bf16.msra.mxu0 %v1982
  %2530 = vmatprep.subr.bf16.mxu0 0
  %2531 = vmatpush1.bf16.msra.mxu0 %v1989
  %2532 = vmatprep.mubr.bf16.mxu0 %v768
  %2533 = vmatmul.mubr.bf16.gmra.mrb[0].mxu0 %v767
  %v2534 = vpop.f32.mrb[0].mxu0
  %v2535 = vadd.f32 %v2495, %v2534
  %v2536 = vpop.f32.mrb[0].mxu0
  %v2537 = vpop.f32.mrb[0].mxu0
  %v2538 = vpop.f32.mrb[0].mxu0
  %2539 = vdwg.mxu0
  %v2540 = vsub.f32 0.0, %v2290
  %v2541 = vsub.f32 0.0, %v2292
  %v2542 = vsub.f32 0.0, %v2372
  %v2543 = vsub.f32 0.0, %v2374
  %v2544 = vsub.f32 0.0, %v2454
  %v2545 = vsub.f32 0.0, %v2456
  %v2546 = vsub.f32 0.0, %v2535
  %v2547 = vmul.f32 %v2540, 1.442695
  %v2548 = vpow.pop %v2547
  %v2549 = vmul.f32 %v2541, 1.442695
  %v2550 = vpow.pop %v2549
  %v2551 = vmul.f32 %v2542, 1.442695
  %v2552 = vpow.pop %v2551
  %v2553 = vmul.f32 %v2543, 1.442695
  %v2554 = vpow.pop %v2553
  %v2555 = vmul.f32 %v2544, 1.442695
  %v2556 = vpow.pop %v2555
  %v2557 = vmul.f32 %v2545, 1.442695
  %v2558 = vpow.pop %v2557
  %v2559 = vmul.f32 %v2546, 1.442695
  %v2560 = vpow.pop %v2559
  %v2561 = vadd.f32 %v2548, 1.0
  %v2562 = vadd.f32 %v2550, 1.0
  %v2563 = vadd.f32 %v2552, 1.0
  %v2564 = vadd.f32 %v2554, 1.0
  %v2565 = vadd.f32 %v2556, 1.0
  %v2566 = vadd.f32 %v2558, 1.0
  %v2567 = vadd.f32 %v2560, 1.0
  %v2568 = vrcp.pop %v2561
  %v2569 = vrcp.pop %v2562
  %v2570 = vrcp.pop %v2563
  %v2571 = vrcp.pop %v2564
  %v2572 = vrcp.pop %v2565
  %v2573 = vrcp.pop %v2566
  %v2574 = vrcp.pop %v2567
  %2575 = vst [vmem:[%s9] sm:$0xff] %v2568
  %2576 = vst [vmem:[%s9 + $0x8] sm:$0xff] %v2569
  %2577 = vst [vmem:[%s9 + $0x10] sm:$0xff] %v2570
  %2578 = vst [vmem:[%s9 + $0x18] sm:$0xff] %v2571
  %2579 = vst [vmem:[%s9 + $0x20] sm:$0xff] %v2572
  %2580 = vst [vmem:[%s9 + $0x28] sm:$0xff] %v2573
  %vm2581 = vcmask 130048
  %2582 = vst.msk [vmem:[%s9 + $0x30] sm:$0xff] %vm2581, %v2574
  // Predicated region
  $region38: #{_mlp_decoder_impl.1} parent=0 // pred_check
    _
  $region39: #{_mlp_decoder_impl.1} parent=0 // pred_check_branch
    %2584 = sbr.rel (0) target = $region41
  $region40: #{_mlp_decoder_impl.1} parent=0 // pred_region
    _
  $region41: #{_mlp_decoder_impl.1} parent=0 // pred_fallthru
    _
  // Predicated region
  $region42: #{_mlp_decoder_impl.1} parent=0 // pred_check
    _
  $region43: #{_mlp_decoder_impl.1} parent=0 // pred_check_branch
    %2586 = sbr.rel (0) target = $region45
  $region44: #{_mlp_decoder_impl.1} parent=0 // pred_region
    _
  $region45: #{_mlp_decoder_impl.1} parent=0 // pred_fallthru
    _

</llo_original>
